<compile_context>
chip_gen: v6e
topology: v6e:2x2x1
jax: 0.10.0
libtpu: 0.0.40
codegen_flags: <defaults>
</compile_context>

<pallas_src>
import functools
import math

import jax
import jax.numpy as jnp
from jax.experimental import pallas as pl
from jax.experimental.pallas import tpu as pltpu

LL_LANES = 128  # lane-dense log-likelihood output width


def _round_up(n, m):
    return ((n + m - 1) // m) * m


def _physical_vmem_bytes():
    """Per-core VMEM capacity (falls back to the smallest generation, v7x)."""
    try:
        info = pltpu.get_tpu_info()
        v = getattr(info, "vmem_capacity_bytes", None)
        if v:
            return int(v)
    except Exception:
        pass
    return 64 * 2**20


# ---------------------------------------------------------------------------
# Pallas kernel: full NICE flow for one batch tile.
#   Forward : couplings -> scaling -> standard-Normal prior log-prob
#   Reverse : inverse scaling -> couplings in reverse order
# ---------------------------------------------------------------------------
def _nice_kernel(xe_ref, xo_ref,
                 w_in_ref, b_in_ref,
                 w_mid_ref, b_mid_ref,
                 w_end_ref, b_end_ref,
                 es_e_ref, es_o_ref,
                 *out_refs,
                 num_coupling, hidden, mask_config, reverse, d_true):
    xe = xe_ref[...].astype(jnp.float32)   # even-indexed features (TILE_B, half_p)
    xo = xo_ref[...].astype(jnp.float32)   # odd-indexed features  (TILE_B, half_p)

    def coupling(xe, xo, c, rev):
        mc = (mask_config + c) % 2          # static per coupling layer
        a, b = (xe, xo) if mc == 0 else (xo, xe)
        # bf16 x bf16 MXU matmuls with f32 accumulation.  Weights stay bf16
        # (no in-kernel f32 weight copies); only the activation LHS is cast.
        # in_block: Linear + ReLU
        h = jnp.maximum(
            jnp.dot(a.astype(jnp.bfloat16), w_in_ref[c],
                    preferred_element_type=jnp.float32) + b_in_ref[c], 0.0)
        # mid_block: (hidden - 1) x (Linear + ReLU)
        for k in range(hidden - 1):
            h = jnp.maximum(
                jnp.dot(h.astype(jnp.bfloat16), w_mid_ref[c, k],
                        preferred_element_type=jnp.float32) + b_mid_ref[c, k], 0.0)
        # end_block: Linear
        a_ = (jnp.dot(h.astype(jnp.bfloat16), w_end_ref[c],
                      preferred_element_type=jnp.float32) + b_end_ref[c])
        b = b - a_ if rev else b + a_
        return (a, b) if mc == 0 else (b, a)

    es_e = es_e_ref[...]   # (1, half_p): exp(scale) fwd / exp(-scale) reverse
    es_o = es_o_ref[...]

    if not reverse:
        for c in range(num_coupling):
            xe, xo = coupling(xe, xo, c, rev=False)
        xe = xe * es_e
        xo = xo * es_o
        xe_out_ref, xo_out_ref, ll_ref = out_refs
        xe_out_ref[...] = xe.astype(xe_out_ref.dtype)
        xo_out_ref[...] = xo.astype(xo_out_ref.dtype)
        # Standard-Normal prior log-prob over the *true* feature dim.
        # Padded lanes are exactly zero (zero-padded inputs & weights), so
        # they contribute 0 to sum(x*x); the -0.5*log(2*pi) constant is added
        # only for the d_true real features.
        c0 = 0.5 * math.log(2.0 * math.pi)
        log_prob = (jnp.sum(-0.5 * xe * xe, axis=1, keepdims=True)
                    + jnp.sum(-0.5 * xo * xo, axis=1, keepdims=True)
                    - c0 * d_true)                                   # (TILE_B, 1)
        # Lane-dense store (broadcast across 128 lanes) -> unmasked vst.
        ll_ref[...] = jnp.broadcast_to(log_prob, ll_ref.shape).astype(ll_ref.dtype)
    else:
        # Generation path: inverse scaling, then couplings in reverse order.
        xe = xe * es_e
        xo = xo * es_o
        for c in reversed(range(num_coupling)):
            xe, xo = coupling(xe, xo, c, rev=True)
        xe_out_ref, xo_out_ref = out_refs
        xe_out_ref[...] = xe.astype(xe_out_ref.dtype)
        xo_out_ref[...] = xo.astype(xo_out_ref.dtype)


# ---------------------------------------------------------------------------
# Wrapper: even/odd interleave split/merge, padding, pallas_call plumbing.
# ---------------------------------------------------------------------------
@functools.partial(jax.jit,
                   static_argnames=("hidden", "mask_config", "reverse", "tile_b"))
def nice_apply(x, params, *, hidden, mask_config, reverse=False, tile_b=512):
    B, W = x.shape
    half = W // 2
    C, _, mid = params["w_in"].shape
    h1 = params["w_mid"].shape[1]          # stored mid layers (>= max(1, hidden-1))

    # Lane-pad feature dims to multiples of 128 -> dense MXU tiles / stores.
    # (Deliberately NOT padded to 256: MXU fill comes from a larger M/TILE_B.)
    half_p = _round_up(half, 128)
    mid_p = _round_up(mid, 128)

    # Batch tiling: TILE_B is a multiple of 8 (sublane constraint) and, when
    # the batch allows, the grid has >= 2 steps so HBM<->VMEM pipelining and
    # v7x megacore sharding of the "parallel" batch axis actually engage.
    B8 = _round_up(B, 8)
    TILE_B = min(_round_up(tile_b, 8), B8)
    if TILE_B >= B8 and B8 >= 16:
        TILE_B = _round_up(B8 // 2, 8)
    B_pad = _round_up(B, TILE_B)
    grid = (B_pad // TILE_B,)

    def pad_to(a, shape):
        return jnp.pad(a, [(0, t - s) for s, t in zip(a.shape, shape)])

    # Interleaved even/odd split (matches torch reshape(B, W//2, 2)) + padding.
    # TODO(synk): the strided 0::2/1::2 deinterleave + pad and the final
    # stack/reshape are extra HBM passes outside the kernel; they could be
    # fused into the pallas_call via CompilerParams(allow_input_fusion=...).
    x_e = pad_to(x[:, 0::2].astype(jnp.float32), (B_pad, half_p))
    x_o = pad_to(x[:, 1::2].astype(jnp.float32), (B_pad, half_p))

    # Hoisted scaling-layer work: exp(+/-scale) and log_J computed once here.
    scale = params["scale"].astype(jnp.float32)            # (1, W)
    es = jnp.exp(-scale) if reverse else jnp.exp(scale)
    es_e = pad_to(es[:, 0::2], (1, half_p))
    es_o = pad_to(es[:, 1::2], (1, half_p))

    # Zero-padded, coupling-stacked weights (bf16, used as-is on the MXU) and
    # biases (f32, broadcast-added as (1, N) rows).
    w_in = pad_to(params["w_in"], (C, half_p, mid_p)).astype(jnp.bfloat16)
    b_in = pad_to(params["b_in"], (C, 1, mid_p)).astype(jnp.float32)
    w_mid = pad_to(params["w_mid"], (C, h1, mid_p, mid_p)).astype(jnp.bfloat16)
    b_mid = pad_to(params["b_mid"], (C, h1, 1, mid_p)).astype(jnp.float32)
    w_end = pad_to(params["w_end"], (C, mid_p, half_p)).astype(jnp.bfloat16)
    b_end = pad_to(params["b_end"], (C, 1, half_p)).astype(jnp.float32)

    kernel = functools.partial(
        _nice_kernel, num_coupling=C, hidden=hidden,
        mask_config=mask_config, reverse=reverse, d_true=W)

    x_spec = pl.BlockSpec((TILE_B, half_p), lambda i: (i, 0))

    def resident(a):   # same block every batch tile -> stays VMEM-resident
        nd = a.ndim
        return pl.BlockSpec(a.shape, lambda i, _nd=nd: (0,) * _nd)

    in_specs = [x_spec, x_spec,
                resident(w_in), resident(b_in),
                resident(w_mid), resident(b_mid),
                resident(w_end), resident(b_end),
                resident(es_e), resident(es_o)]

    out_shapes = [jax.ShapeDtypeStruct((B_pad, half_p), jnp.float32),
                  jax.ShapeDtypeStruct((B_pad, half_p), jnp.float32)]
    out_specs = [x_spec, x_spec]
    if not reverse:   # reverse mode has no log-likelihood output at all
        out_shapes.append(jax.ShapeDtypeStruct((B_pad, LL_LANES), jnp.float32))
        out_specs.append(pl.BlockSpec((TILE_B, LL_LANES), lambda i: (i, 0)))

    # VMEM budget: fit resident weights + double-buffered I/O tiles, capped at
    # ~80% of the chip's physical VMEM (leaves headroom for compiler scratch;
    # avoids requesting all 64 MiB on v7x while allowing >64 MiB on v5e/v6e).
    def nbytes(a):
        return a.size * a.dtype.itemsize
    weight_bytes = sum(nbytes(a) for a in (w_in, b_in, w_mid, b_mid, w_end, b_end))
    io_tile_bytes = 2 * TILE_B * (2 * half_p + len(out_shapes) * half_p) * 4
    act_bytes = 4 * TILE_B * mid_p * 4
    vmem_need = weight_bytes + io_tile_bytes + act_bytes
    vmem_cap = int(0.8 * _physical_vmem_bytes())
    vmem_limit = int(min(max(2 * vmem_need, 32 * 2**20), vmem_cap))
    # TODO(synk): if the resident bf16 weight stack approaches vmem_cap (large
    # mid_dim / many couplings, esp. v7x's 64 MiB), stream w_mid per coupling
    # from HBM (memory_space=pl.ANY) with a 2-deep pltpu.make_async_copy double
    # buffer instead of keeping everything resident.

    flops = 2 * B_pad * C * (half_p * mid_p
                             + (hidden - 1) * mid_p * mid_p
                             + mid_p * half_p)
    bytes_accessed = weight_bytes + (2 + len(out_shapes)) * B_pad * half_p * 4

    outs = pl.pallas_call(
        kernel,
        out_shape=tuple(out_shapes),
        grid_spec=pltpu.PrefetchScalarGridSpec(
            num_scalar_prefetch=0,
            grid=grid,
            in_specs=in_specs,
            out_specs=tuple(out_specs)),
        compiler_params=pltpu.CompilerParams(
            dimension_semantics=("parallel",),     # megacore sharding on v7x
            vmem_limit_bytes=vmem_limit),
        cost_estimate=pl.CostEstimate(
            flops=int(flops), transcendentals=0,
            bytes_accessed=int(bytes_accessed)),
    )(x_e, x_o, w_in, b_in, w_mid, b_mid, w_end, b_end, es_e, es_o)

    # Un-pad and interleave back to (B, W).
    xe_o = outs[0][:B, :half]
    xo_o = outs[1][:B, :half]
    x_out = jnp.stack((xe_o, xo_o), axis=2).reshape(B, W)
    if reverse:
        return x_out
    log_J = jnp.sum(scale)
    return x_out, outs[2][:B, 0] + log_J


# ---------------------------------------------------------------------------
# Deterministic parameter construction (synthetic, not a checkpoint).
# Weights are stored pre-transposed to (in, out), stacked over couplings, bf16.
# ---------------------------------------------------------------------------
def make_params(key, in_out_dim, mid_dim, num_coupling, hidden):
    half = in_out_dim // 2
    ks = jax.random.split(key, 6)
    h1 = max(1, hidden - 1)

    def uinit(k, shape, fan_in, dtype):
        bound = 1.0 / math.sqrt(fan_in)
        return jax.random.uniform(k, shape, jnp.float32, -bound, bound).astype(dtype)

    return {
        "w_in":  uinit(ks[0], (num_coupling, half, mid_dim), half, jnp.bfloat16),
        "b_in":  uinit(ks[1], (num_coupling, 1, mid_dim), half, jnp.float32),
        "w_mid": uinit(ks[2], (num_coupling, h1, mid_dim, mid_dim), mid_dim, jnp.bfloat16),
        "b_mid": uinit(ks[3], (num_coupling, h1, 1, mid_dim), mid_dim, jnp.float32),
        "w_end": uinit(ks[4], (num_coupling, mid_dim, half), mid_dim, jnp.bfloat16),
        "b_end": uinit(ks[5], (num_coupling, 1, half), mid_dim, jnp.float32),
        "scale": jnp.zeros((1, in_out_dim), jnp.float32),  # nn.Parameter(zeros)
    }


# ---------------------------------------------------------------------------
# Pure-JAX reference (mirrors the PyTorch forward; same bf16 weights and the
# same bf16-LHS / f32-accumulate matmul recipe as the kernel).
# ---------------------------------------------------------------------------
def nice_reference(x, params, *, hidden, mask_config):
    B, W = x.shape
    C = params["w_in"].shape[0]

    def mm(lhs, w):
        return jnp.dot(lhs.astype(jnp.bfloat16), w,
                       preferred_element_type=jnp.float32)

    def coupling_fwd(x, c):
        mc = (mask_config + c) % 2
        xr = x.reshape(B, W // 2, 2)
        if mc == 0:
            a, b = xr[:, :, 0], xr[:, :, 1]
        else:
            b, a = xr[:, :, 0], xr[:, :, 1]
        h = jax.nn.relu(mm(a, params["w_in"][c]) + params["b_in"][c])
        for k in range(hidden - 1):
            h = jax.nn.relu(mm(h, params["w_mid"][c, k]) + params["b_mid"][c, k])
        a_ = mm(h, params["w_end"][c]) + params["b_end"][c]
        b = b + a_
        out = jnp.stack((a, b), axis=2) if mc == 0 else jnp.stack((b, a), axis=2)
        return out.reshape(B, W)

    for c in range(C):
        x = coupling_fwd(x, c)
    log_J = jnp.sum(params["scale"])
    x = x * jnp.exp(params["scale"])
    log_prob = jnp.sum(-0.5 * x * x - 0.5 * math.log(2.0 * math.pi), axis=1)
    return x, log_prob + log_J


# ---------------------------------------------------------------------------
if __name__ == "__main__":
    B = 16
    in_out_dim = 16      # W
    mid_dim = 32
    num_coupling = 4
    hidden = 3
    mask_config = 1

    key = jax.random.PRNGKey(0)
    kp, kx = jax.random.split(key)
    params = make_params(kp, in_out_dim, mid_dim, num_coupling, hidden)
    x = jax.random.normal(kx, (B, in_out_dim), jnp.float32)

    # Forward (learning direction): returns (z, log-likelihood)
    z, ll = nice_apply(x, params, hidden=hidden, mask_config=mask_config,
                       reverse=False)
    z = jax.block_until_ready(z)
    ll = jax.block_until_ready(ll)

    # Check against pure-JAX reference of the PyTorch forward (same bf16 path)
    z_ref, ll_ref = nice_reference(x, params, hidden=hidden,
                                   mask_config=mask_config)
    assert jnp.allclose(z, z_ref, atol=2e-3, rtol=2e-3), "z mismatch"
    assert jnp.allclose(ll, ll_ref, atol=1e-2, rtol=1e-3), "log-likelihood mismatch"

    # Round-trip through the generation (reverse) path recovers the input
    x_rec = nice_apply(z, params, hidden=hidden, mask_config=mask_config,
                       reverse=True)
    x_rec = jax.block_until_ready(x_rec)
    assert jnp.allclose(x_rec, x, atol=1e-3, rtol=1e-3), "inverse mismatch"

    print("KERNEL_OK")
</pallas_src>

<mosaic_0001>
module attributes {stable_mosaic.version = 11 : i64} {
  func.func @_nice_kernel(%arg0: i32, %arg1: memref<8x128xf32, #tpu.memory_space<vmem>>, %arg2: memref<8x128xf32, #tpu.memory_space<vmem>>, %arg3: memref<4x128x128xbf16, #tpu.memory_space<vmem>>, %arg4: memref<4x1x128xf32, #tpu.memory_space<vmem>>, %arg5: memref<4x2x128x128xbf16, #tpu.memory_space<vmem>>, %arg6: memref<4x2x1x128xf32, #tpu.memory_space<vmem>>, %arg7: memref<4x128x128xbf16, #tpu.memory_space<vmem>>, %arg8: memref<4x1x128xf32, #tpu.memory_space<vmem>>, %arg9: memref<1x128xf32, #tpu.memory_space<vmem>>, %arg10: memref<1x128xf32, #tpu.memory_space<vmem>>, %arg11: memref<8x128xf32, #tpu.memory_space<vmem>>, %arg12: memref<8x128xf32, #tpu.memory_space<vmem>>, %arg13: memref<8x128xf32, #tpu.memory_space<vmem>>) attributes {dimension_semantics = [#tpu.dimension_semantics<parallel>], iteration_bounds = array<i64: 2>, scalar_prefetch = 0 : i64, scratch_operands = 0 : i64, tpu.core_type = #tpu.core_type<tc>, window_params = [{transform_indices = @transform_0, window_bounds = array<i64: 8, 128>}, {transform_indices = @transform_1, window_bounds = array<i64: 8, 128>}, {pipeline_mode = #tpu.pipeline_mode<synchronous>, transform_indices = @transform_2, window_bounds = array<i64: 4, 128, 128>}, {pipeline_mode = #tpu.pipeline_mode<synchronous>, transform_indices = @transform_3, window_bounds = array<i64: 4, 1, 128>}, {pipeline_mode = #tpu.pipeline_mode<synchronous>, transform_indices = @transform_4, window_bounds = array<i64: 4, 2, 128, 128>}, {pipeline_mode = #tpu.pipeline_mode<synchronous>, transform_indices = @transform_5, window_bounds = array<i64: 4, 2, 1, 128>}, {pipeline_mode = #tpu.pipeline_mode<synchronous>, transform_indices = @transform_6, window_bounds = array<i64: 4, 128, 128>}, {pipeline_mode = #tpu.pipeline_mode<synchronous>, transform_indices = @transform_7, window_bounds = array<i64: 4, 1, 128>}, {pipeline_mode = #tpu.pipeline_mode<synchronous>, transform_indices = @transform_8, window_bounds = array<i64: 1, 128>}, {pipeline_mode = #tpu.pipeline_mode<synchronous>, transform_indices = @transform_9, window_bounds = array<i64: 1, 128>}, {transform_indices = @transform_10, window_bounds = array<i64: 8, 128>}, {transform_indices = @transform_11, window_bounds = array<i64: 8, 128>}, {transform_indices = @transform_12, window_bounds = array<i64: 8, 128>}]} {
    %c0 = arith.constant 0 : index
    %c0_0 = arith.constant 0 : index
    %0 = vector.load %arg1[%c0, %c0_0] : memref<8x128xf32, #tpu.memory_space<vmem>>, vector<8x128xf32>
    %c0_1 = arith.constant 0 : index
    %c0_2 = arith.constant 0 : index
    %1 = vector.load %arg2[%c0_1, %c0_2] : memref<8x128xf32, #tpu.memory_space<vmem>>, vector<8x128xf32>
    %c0_3 = arith.constant 0 : index
    %c0_4 = arith.constant 0 : index
    %2 = vector.load %arg9[%c0_3, %c0_4] : memref<1x128xf32, #tpu.memory_space<vmem>>, vector<1x128xf32>
    %c0_5 = arith.constant 0 : index
    %c0_6 = arith.constant 0 : index
    %3 = vector.load %arg10[%c0_5, %c0_6] : memref<1x128xf32, #tpu.memory_space<vmem>>, vector<1x128xf32>
    %4 = arith.truncf %1 : vector<8x128xf32> to vector<8x128xbf16>
    %c0_7 = arith.constant 0 : index
    %c0_8 = arith.constant 0 : index
    %c0_9 = arith.constant 0 : index
    %5 = vector.load %arg3[%c0_7, %c0_8, %c0_9] : memref<4x128x128xbf16, #tpu.memory_space<vmem>>, vector<1x128x128xbf16>
    %6 = vector.shape_cast %5 : vector<1x128x128xbf16> to vector<128x128xbf16>
    %cst = arith.constant dense<0.000000e+00> : vector<8x128xf32>
    %7 = tpu.matmul %4, %6, %cst {dimension_numbers = #tpu.dot_dimension_numbers<[1], [0], [0], [1], [0, 0, 1, 1], [], []>} : vector<8x128xbf16>, vector<128x128xbf16>, vector<8x128xf32> -> vector<8x128xf32>
    %c0_10 = arith.constant 0 : index
    %c0_11 = arith.constant 0 : index
    %c0_12 = arith.constant 0 : index
    %8 = vector.load %arg4[%c0_10, %c0_11, %c0_12] : memref<4x1x128xf32, #tpu.memory_space<vmem>>, vector<1x1x128xf32>
    %9 = vector.shape_cast %8 : vector<1x1x128xf32> to vector<1x128xf32>
    %10 = vector.broadcast %9 : vector<1x128xf32> to vector<8x128xf32>
    %11 = arith.addf %7, %10 : vector<8x128xf32>
    %cst_13 = arith.constant 0.000000e+00 : f32
    %12 = vector.broadcast %cst_13 : f32 to vector<8x128xf32>
    %13 = arith.maximumf %11, %12 : vector<8x128xf32>
    %14 = arith.truncf %13 : vector<8x128xf32> to vector<8x128xbf16>
    %c0_14 = arith.constant 0 : index
    %c0_15 = arith.constant 0 : index
    %c0_16 = arith.constant 0 : index
    %c0_17 = arith.constant 0 : index
    %15 = vector.load %arg5[%c0_14, %c0_15, %c0_16, %c0_17] : memref<4x2x128x128xbf16, #tpu.memory_space<vmem>>, vector<1x1x128x128xbf16>
    %16 = vector.shape_cast %15 : vector<1x1x128x128xbf16> to vector<128x128xbf16>
    %cst_18 = arith.constant dense<0.000000e+00> : vector<8x128xf32>
    %17 = tpu.matmul %14, %16, %cst_18 {dimension_numbers = #tpu.dot_dimension_numbers<[1], [0], [0], [1], [0, 0, 1, 1], [], []>} : vector<8x128xbf16>, vector<128x128xbf16>, vector<8x128xf32> -> vector<8x128xf32>
    %c0_19 = arith.constant 0 : index
    %c0_20 = arith.constant 0 : index
    %c0_21 = arith.constant 0 : index
    %c0_22 = arith.constant 0 : index
    %18 = vector.load %arg6[%c0_19, %c0_20, %c0_21, %c0_22] : memref<4x2x1x128xf32, #tpu.memory_space<vmem>>, vector<1x1x1x128xf32>
    %19 = vector.shape_cast %18 : vector<1x1x1x128xf32> to vector<1x128xf32>
    %20 = vector.broadcast %19 : vector<1x128xf32> to vector<8x128xf32>
    %21 = arith.addf %17, %20 : vector<8x128xf32>
    %cst_23 = arith.constant 0.000000e+00 : f32
    %22 = vector.broadcast %cst_23 : f32 to vector<8x128xf32>
    %23 = arith.maximumf %21, %22 : vector<8x128xf32>
    %24 = arith.truncf %23 : vector<8x128xf32> to vector<8x128xbf16>
    %c0_24 = arith.constant 0 : index
    %c1 = arith.constant 1 : index
    %c0_25 = arith.constant 0 : index
    %c0_26 = arith.constant 0 : index
    %25 = vector.load %arg5[%c0_24, %c1, %c0_25, %c0_26] : memref<4x2x128x128xbf16, #tpu.memory_space<vmem>>, vector<1x1x128x128xbf16>
    %26 = vector.shape_cast %25 : vector<1x1x128x128xbf16> to vector<128x128xbf16>
    %cst_27 = arith.constant dense<0.000000e+00> : vector<8x128xf32>
    %27 = tpu.matmul %24, %26, %cst_27 {dimension_numbers = #tpu.dot_dimension_numbers<[1], [0], [0], [1], [0, 0, 1, 1], [], []>} : vector<8x128xbf16>, vector<128x128xbf16>, vector<8x128xf32> -> vector<8x128xf32>
    %c0_28 = arith.constant 0 : index
    %c1_29 = arith.constant 1 : index
    %c0_30 = arith.constant 0 : index
    %c0_31 = arith.constant 0 : index
    %28 = vector.load %arg6[%c0_28, %c1_29, %c0_30, %c0_31] : memref<4x2x1x128xf32, #tpu.memory_space<vmem>>, vector<1x1x1x128xf32>
    %29 = vector.shape_cast %28 : vector<1x1x1x128xf32> to vector<1x128xf32>
    %30 = vector.broadcast %29 : vector<1x128xf32> to vector<8x128xf32>
    %31 = arith.addf %27, %30 : vector<8x128xf32>
    %cst_32 = arith.constant 0.000000e+00 : f32
    %32 = vector.broadcast %cst_32 : f32 to vector<8x128xf32>
    %33 = arith.maximumf %31, %32 : vector<8x128xf32>
    %34 = arith.truncf %33 : vector<8x128xf32> to vector<8x128xbf16>
    %c0_33 = arith.constant 0 : index
    %c0_34 = arith.constant 0 : index
    %c0_35 = arith.constant 0 : index
    %35 = vector.load %arg7[%c0_33, %c0_34, %c0_35] : memref<4x128x128xbf16, #tpu.memory_space<vmem>>, vector<1x128x128xbf16>
    %36 = vector.shape_cast %35 : vector<1x128x128xbf16> to vector<128x128xbf16>
    %cst_36 = arith.constant dense<0.000000e+00> : vector<8x128xf32>
    %37 = tpu.matmul %34, %36, %cst_36 {dimension_numbers = #tpu.dot_dimension_numbers<[1], [0], [0], [1], [0, 0, 1, 1], [], []>} : vector<8x128xbf16>, vector<128x128xbf16>, vector<8x128xf32> -> vector<8x128xf32>
    %c0_37 = arith.constant 0 : index
    %c0_38 = arith.constant 0 : index
    %c0_39 = arith.constant 0 : index
    %38 = vector.load %arg8[%c0_37, %c0_38, %c0_39] : memref<4x1x128xf32, #tpu.memory_space<vmem>>, vector<1x1x128xf32>
    %39 = vector.shape_cast %38 : vector<1x1x128xf32> to vector<1x128xf32>
    %40 = vector.broadcast %39 : vector<1x128xf32> to vector<8x128xf32>
    %41 = arith.addf %37, %40 : vector<8x128xf32>
    %42 = arith.addf %0, %41 : vector<8x128xf32>
    %43 = arith.truncf %42 : vector<8x128xf32> to vector<8x128xbf16>
    %c1_40 = arith.constant 1 : index
    %c0_41 = arith.constant 0 : index
    %c0_42 = arith.constant 0 : index
    %44 = vector.load %arg3[%c1_40, %c0_41, %c0_42] : memref<4x128x128xbf16, #tpu.memory_space<vmem>>, vector<1x128x128xbf16>
    %45 = vector.shape_cast %44 : vector<1x128x128xbf16> to vector<128x128xbf16>
    %cst_43 = arith.constant dense<0.000000e+00> : vector<8x128xf32>
    %46 = tpu.matmul %43, %45, %cst_43 {dimension_numbers = #tpu.dot_dimension_numbers<[1], [0], [0], [1], [0, 0, 1, 1], [], []>} : vector<8x128xbf16>, vector<128x128xbf16>, vector<8x128xf32> -> vector<8x128xf32>
    %c1_44 = arith.constant 1 : index
    %c0_45 = arith.constant 0 : index
    %c0_46 = arith.constant 0 : index
    %47 = vector.load %arg4[%c1_44, %c0_45, %c0_46] : memref<4x1x128xf32, #tpu.memory_space<vmem>>, vector<1x1x128xf32>
    %48 = vector.shape_cast %47 : vector<1x1x128xf32> to vector<1x128xf32>
    %49 = vector.broadcast %48 : vector<1x128xf32> to vector<8x128xf32>
    %50 = arith.addf %46, %49 : vector<8x128xf32>
    %cst_47 = arith.constant 0.000000e+00 : f32
    %51 = vector.broadcast %cst_47 : f32 to vector<8x128xf32>
    %52 = arith.maximumf %50, %51 : vector<8x128xf32>
    %53 = arith.truncf %52 : vector<8x128xf32> to vector<8x128xbf16>
    %c1_48 = arith.constant 1 : index
    %c0_49 = arith.constant 0 : index
    %c0_50 = arith.constant 0 : index
    %c0_51 = arith.constant 0 : index
    %54 = vector.load %arg5[%c1_48, %c0_49, %c0_50, %c0_51] : memref<4x2x128x128xbf16, #tpu.memory_space<vmem>>, vector<1x1x128x128xbf16>
    %55 = vector.shape_cast %54 : vector<1x1x128x128xbf16> to vector<128x128xbf16>
    %cst_52 = arith.constant dense<0.000000e+00> : vector<8x128xf32>
    %56 = tpu.matmul %53, %55, %cst_52 {dimension_numbers = #tpu.dot_dimension_numbers<[1], [0], [0], [1], [0, 0, 1, 1], [], []>} : vector<8x128xbf16>, vector<128x128xbf16>, vector<8x128xf32> -> vector<8x128xf32>
    %c1_53 = arith.constant 1 : index
    %c0_54 = arith.constant 0 : index
    %c0_55 = arith.constant 0 : index
    %c0_56 = arith.constant 0 : index
    %57 = vector.load %arg6[%c1_53, %c0_54, %c0_55, %c0_56] : memref<4x2x1x128xf32, #tpu.memory_space<vmem>>, vector<1x1x1x128xf32>
    %58 = vector.shape_cast %57 : vector<1x1x1x128xf32> to vector<1x128xf32>
    %59 = vector.broadcast %58 : vector<1x128xf32> to vector<8x128xf32>
    %60 = arith.addf %56, %59 : vector<8x128xf32>
    %cst_57 = arith.constant 0.000000e+00 : f32
    %61 = vector.broadcast %cst_57 : f32 to vector<8x128xf32>
    %62 = arith.maximumf %60, %61 : vector<8x128xf32>
    %63 = arith.truncf %62 : vector<8x128xf32> to vector<8x128xbf16>
    %c1_58 = arith.constant 1 : index
    %c1_59 = arith.constant 1 : index
    %c0_60 = arith.constant 0 : index
    %c0_61 = arith.constant 0 : index
    %64 = vector.load %arg5[%c1_58, %c1_59, %c0_60, %c0_61] : memref<4x2x128x128xbf16, #tpu.memory_space<vmem>>, vector<1x1x128x128xbf16>
    %65 = vector.shape_cast %64 : vector<1x1x128x128xbf16> to vector<128x128xbf16>
    %cst_62 = arith.constant dense<0.000000e+00> : vector<8x128xf32>
    %66 = tpu.matmul %63, %65, %cst_62 {dimension_numbers = #tpu.dot_dimension_numbers<[1], [0], [0], [1], [0, 0, 1, 1], [], []>} : vector<8x128xbf16>, vector<128x128xbf16>, vector<8x128xf32> -> vector<8x128xf32>
    %c1_63 = arith.constant 1 : index
    %c1_64 = arith.constant 1 : index
    %c0_65 = arith.constant 0 : index
    %c0_66 = arith.constant 0 : index
    %67 = vector.load %arg6[%c1_63, %c1_64, %c0_65, %c0_66] : memref<4x2x1x128xf32, #tpu.memory_space<vmem>>, vector<1x1x1x128xf32>
    %68 = vector.shape_cast %67 : vector<1x1x1x128xf32> to vector<1x128xf32>
    %69 = vector.broadcast %68 : vector<1x128xf32> to vector<8x128xf32>
    %70 = arith.addf %66, %69 : vector<8x128xf32>
    %cst_67 = arith.constant 0.000000e+00 : f32
    %71 = vector.broadcast %cst_67 : f32 to vector<8x128xf32>
    %72 = arith.maximumf %70, %71 : vector<8x128xf32>
    %73 = arith.truncf %72 : vector<8x128xf32> to vector<8x128xbf16>
    %c1_68 = arith.constant 1 : index
    %c0_69 = arith.constant 0 : index
    %c0_70 = arith.constant 0 : index
    %74 = vector.load %arg7[%c1_68, %c0_69, %c0_70] : memref<4x128x128xbf16, #tpu.memory_space<vmem>>, vector<1x128x128xbf16>
    %75 = vector.shape_cast %74 : vector<1x128x128xbf16> to vector<128x128xbf16>
    %cst_71 = arith.constant dense<0.000000e+00> : vector<8x128xf32>
    %76 = tpu.matmul %73, %75, %cst_71 {dimension_numbers = #tpu.dot_dimension_numbers<[1], [0], [0], [1], [0, 0, 1, 1], [], []>} : vector<8x128xbf16>, vector<128x128xbf16>, vector<8x128xf32> -> vector<8x128xf32>
    %c1_72 = arith.constant 1 : index
    %c0_73 = arith.constant 0 : index
    %c0_74 = arith.constant 0 : index
    %77 = vector.load %arg8[%c1_72, %c0_73, %c0_74] : memref<4x1x128xf32, #tpu.memory_space<vmem>>, vector<1x1x128xf32>
    %78 = vector.shape_cast %77 : vector<1x1x128xf32> to vector<1x128xf32>
    %79 = vector.broadcast %78 : vector<1x128xf32> to vector<8x128xf32>
    %80 = arith.addf %76, %79 : vector<8x128xf32>
    %81 = arith.addf %1, %80 : vector<8x128xf32>
    %82 = arith.truncf %81 : vector<8x128xf32> to vector<8x128xbf16>
    %c2 = arith.constant 2 : index
    %c0_75 = arith.constant 0 : index
    %c0_76 = arith.constant 0 : index
    %83 = vector.load %arg3[%c2, %c0_75, %c0_76] : memref<4x128x128xbf16, #tpu.memory_space<vmem>>, vector<1x128x128xbf16>
    %84 = vector.shape_cast %83 : vector<1x128x128xbf16> to vector<128x128xbf16>
    %cst_77 = arith.constant dense<0.000000e+00> : vector<8x128xf32>
    %85 = tpu.matmul %82, %84, %cst_77 {dimension_numbers = #tpu.dot_dimension_numbers<[1], [0], [0], [1], [0, 0, 1, 1], [], []>} : vector<8x128xbf16>, vector<128x128xbf16>, vector<8x128xf32> -> vector<8x128xf32>
    %c2_78 = arith.constant 2 : index
    %c0_79 = arith.constant 0 : index
    %c0_80 = arith.constant 0 : index
    %86 = vector.load %arg4[%c2_78, %c0_79, %c0_80] : memref<4x1x128xf32, #tpu.memory_space<vmem>>, vector<1x1x128xf32>
    %87 = vector.shape_cast %86 : vector<1x1x128xf32> to vector<1x128xf32>
    %88 = vector.broadcast %87 : vector<1x128xf32> to vector<8x128xf32>
    %89 = arith.addf %85, %88 : vector<8x128xf32>
    %cst_81 = arith.constant 0.000000e+00 : f32
    %90 = vector.broadcast %cst_81 : f32 to vector<8x128xf32>
    %91 = arith.maximumf %89, %90 : vector<8x128xf32>
    %92 = arith.truncf %91 : vector<8x128xf32> to vector<8x128xbf16>
    %c2_82 = arith.constant 2 : index
    %c0_83 = arith.constant 0 : index
    %c0_84 = arith.constant 0 : index
    %c0_85 = arith.constant 0 : index
    %93 = vector.load %arg5[%c2_82, %c0_83, %c0_84, %c0_85] : memref<4x2x128x128xbf16, #tpu.memory_space<vmem>>, vector<1x1x128x128xbf16>
    %94 = vector.shape_cast %93 : vector<1x1x128x128xbf16> to vector<128x128xbf16>
    %cst_86 = arith.constant dense<0.000000e+00> : vector<8x128xf32>
    %95 = tpu.matmul %92, %94, %cst_86 {dimension_numbers = #tpu.dot_dimension_numbers<[1], [0], [0], [1], [0, 0, 1, 1], [], []>} : vector<8x128xbf16>, vector<128x128xbf16>, vector<8x128xf32> -> vector<8x128xf32>
    %c2_87 = arith.constant 2 : index
    %c0_88 = arith.constant 0 : index
    %c0_89 = arith.constant 0 : index
    %c0_90 = arith.constant 0 : index
    %96 = vector.load %arg6[%c2_87, %c0_88, %c0_89, %c0_90] : memref<4x2x1x128xf32, #tpu.memory_space<vmem>>, vector<1x1x1x128xf32>
    %97 = vector.shape_cast %96 : vector<1x1x1x128xf32> to vector<1x128xf32>
    %98 = vector.broadcast %97 : vector<1x128xf32> to vector<8x128xf32>
    %99 = arith.addf %95, %98 : vector<8x128xf32>
    %cst_91 = arith.constant 0.000000e+00 : f32
    %100 = vector.broadcast %cst_91 : f32 to vector<8x128xf32>
    %101 = arith.maximumf %99, %100 : vector<8x128xf32>
    %102 = arith.truncf %101 : vector<8x128xf32> to vector<8x128xbf16>
    %c2_92 = arith.constant 2 : index
    %c1_93 = arith.constant 1 : index
    %c0_94 = arith.constant 0 : index
    %c0_95 = arith.constant 0 : index
    %103 = vector.load %arg5[%c2_92, %c1_93, %c0_94, %c0_95] : memref<4x2x128x128xbf16, #tpu.memory_space<vmem>>, vector<1x1x128x128xbf16>
    %104 = vector.shape_cast %103 : vector<1x1x128x128xbf16> to vector<128x128xbf16>
    %cst_96 = arith.constant dense<0.000000e+00> : vector<8x128xf32>
    %105 = tpu.matmul %102, %104, %cst_96 {dimension_numbers = #tpu.dot_dimension_numbers<[1], [0], [0], [1], [0, 0, 1, 1], [], []>} : vector<8x128xbf16>, vector<128x128xbf16>, vector<8x128xf32> -> vector<8x128xf32>
    %c2_97 = arith.constant 2 : index
    %c1_98 = arith.constant 1 : index
    %c0_99 = arith.constant 0 : index
    %c0_100 = arith.constant 0 : index
    %106 = vector.load %arg6[%c2_97, %c1_98, %c0_99, %c0_100] : memref<4x2x1x128xf32, #tpu.memory_space<vmem>>, vector<1x1x1x128xf32>
    %107 = vector.shape_cast %106 : vector<1x1x1x128xf32> to vector<1x128xf32>
    %108 = vector.broadcast %107 : vector<1x128xf32> to vector<8x128xf32>
    %109 = arith.addf %105, %108 : vector<8x128xf32>
    %cst_101 = arith.constant 0.000000e+00 : f32
    %110 = vector.broadcast %cst_101 : f32 to vector<8x128xf32>
    %111 = arith.maximumf %109, %110 : vector<8x128xf32>
    %112 = arith.truncf %111 : vector<8x128xf32> to vector<8x128xbf16>
    %c2_102 = arith.constant 2 : index
    %c0_103 = arith.constant 0 : index
    %c0_104 = arith.constant 0 : index
    %113 = vector.load %arg7[%c2_102, %c0_103, %c0_104] : memref<4x128x128xbf16, #tpu.memory_space<vmem>>, vector<1x128x128xbf16>
    %114 = vector.shape_cast %113 : vector<1x128x128xbf16> to vector<128x128xbf16>
    %cst_105 = arith.constant dense<0.000000e+00> : vector<8x128xf32>
    %115 = tpu.matmul %112, %114, %cst_105 {dimension_numbers = #tpu.dot_dimension_numbers<[1], [0], [0], [1], [0, 0, 1, 1], [], []>} : vector<8x128xbf16>, vector<128x128xbf16>, vector<8x128xf32> -> vector<8x128xf32>
    %c2_106 = arith.constant 2 : index
    %c0_107 = arith.constant 0 : index
    %c0_108 = arith.constant 0 : index
    %116 = vector.load %arg8[%c2_106, %c0_107, %c0_108] : memref<4x1x128xf32, #tpu.memory_space<vmem>>, vector<1x1x128xf32>
    %117 = vector.shape_cast %116 : vector<1x1x128xf32> to vector<1x128xf32>
    %118 = vector.broadcast %117 : vector<1x128xf32> to vector<8x128xf32>
    %119 = arith.addf %115, %118 : vector<8x128xf32>
    %120 = arith.addf %42, %119 : vector<8x128xf32>
    %121 = arith.truncf %120 : vector<8x128xf32> to vector<8x128xbf16>
    %c3 = arith.constant 3 : index
    %c0_109 = arith.constant 0 : index
    %c0_110 = arith.constant 0 : index
    %122 = vector.load %arg3[%c3, %c0_109, %c0_110] : memref<4x128x128xbf16, #tpu.memory_space<vmem>>, vector<1x128x128xbf16>
    %123 = vector.shape_cast %122 : vector<1x128x128xbf16> to vector<128x128xbf16>
    %cst_111 = arith.constant dense<0.000000e+00> : vector<8x128xf32>
    %124 = tpu.matmul %121, %123, %cst_111 {dimension_numbers = #tpu.dot_dimension_numbers<[1], [0], [0], [1], [0, 0, 1, 1], [], []>} : vector<8x128xbf16>, vector<128x128xbf16>, vector<8x128xf32> -> vector<8x128xf32>
    %c3_112 = arith.constant 3 : index
    %c0_113 = arith.constant 0 : index
    %c0_114 = arith.constant 0 : index
    %125 = vector.load %arg4[%c3_112, %c0_113, %c0_114] : memref<4x1x128xf32, #tpu.memory_space<vmem>>, vector<1x1x128xf32>
    %126 = vector.shape_cast %125 : vector<1x1x128xf32> to vector<1x128xf32>
    %127 = vector.broadcast %126 : vector<1x128xf32> to vector<8x128xf32>
    %128 = arith.addf %124, %127 : vector<8x128xf32>
    %cst_115 = arith.constant 0.000000e+00 : f32
    %129 = vector.broadcast %cst_115 : f32 to vector<8x128xf32>
    %130 = arith.maximumf %128, %129 : vector<8x128xf32>
    %131 = arith.truncf %130 : vector<8x128xf32> to vector<8x128xbf16>
    %c3_116 = arith.constant 3 : index
    %c0_117 = arith.constant 0 : index
    %c0_118 = arith.constant 0 : index
    %c0_119 = arith.constant 0 : index
    %132 = vector.load %arg5[%c3_116, %c0_117, %c0_118, %c0_119] : memref<4x2x128x128xbf16, #tpu.memory_space<vmem>>, vector<1x1x128x128xbf16>
    %133 = vector.shape_cast %132 : vector<1x1x128x128xbf16> to vector<128x128xbf16>
    %cst_120 = arith.constant dense<0.000000e+00> : vector<8x128xf32>
    %134 = tpu.matmul %131, %133, %cst_120 {dimension_numbers = #tpu.dot_dimension_numbers<[1], [0], [0], [1], [0, 0, 1, 1], [], []>} : vector<8x128xbf16>, vector<128x128xbf16>, vector<8x128xf32> -> vector<8x128xf32>
    %c3_121 = arith.constant 3 : index
    %c0_122 = arith.constant 0 : index
    %c0_123 = arith.constant 0 : index
    %c0_124 = arith.constant 0 : index
    %135 = vector.load %arg6[%c3_121, %c0_122, %c0_123, %c0_124] : memref<4x2x1x128xf32, #tpu.memory_space<vmem>>, vector<1x1x1x128xf32>
    %136 = vector.shape_cast %135 : vector<1x1x1x128xf32> to vector<1x128xf32>
    %137 = vector.broadcast %136 : vector<1x128xf32> to vector<8x128xf32>
    %138 = arith.addf %134, %137 : vector<8x128xf32>
    %cst_125 = arith.constant 0.000000e+00 : f32
    %139 = vector.broadcast %cst_125 : f32 to vector<8x128xf32>
    %140 = arith.maximumf %138, %139 : vector<8x128xf32>
    %141 = arith.truncf %140 : vector<8x128xf32> to vector<8x128xbf16>
    %c3_126 = arith.constant 3 : index
    %c1_127 = arith.constant 1 : index
    %c0_128 = arith.constant 0 : index
    %c0_129 = arith.constant 0 : index
    %142 = vector.load %arg5[%c3_126, %c1_127, %c0_128, %c0_129] : memref<4x2x128x128xbf16, #tpu.memory_space<vmem>>, vector<1x1x128x128xbf16>
    %143 = vector.shape_cast %142 : vector<1x1x128x128xbf16> to vector<128x128xbf16>
    %cst_130 = arith.constant dense<0.000000e+00> : vector<8x128xf32>
    %144 = tpu.matmul %141, %143, %cst_130 {dimension_numbers = #tpu.dot_dimension_numbers<[1], [0], [0], [1], [0, 0, 1, 1], [], []>} : vector<8x128xbf16>, vector<128x128xbf16>, vector<8x128xf32> -> vector<8x128xf32>
    %c3_131 = arith.constant 3 : index
    %c1_132 = arith.constant 1 : index
    %c0_133 = arith.constant 0 : index
    %c0_134 = arith.constant 0 : index
    %145 = vector.load %arg6[%c3_131, %c1_132, %c0_133, %c0_134] : memref<4x2x1x128xf32, #tpu.memory_space<vmem>>, vector<1x1x1x128xf32>
    %146 = vector.shape_cast %145 : vector<1x1x1x128xf32> to vector<1x128xf32>
    %147 = vector.broadcast %146 : vector<1x128xf32> to vector<8x128xf32>
    %148 = arith.addf %144, %147 : vector<8x128xf32>
    %cst_135 = arith.constant 0.000000e+00 : f32
    %149 = vector.broadcast %cst_135 : f32 to vector<8x128xf32>
    %150 = arith.maximumf %148, %149 : vector<8x128xf32>
    %151 = arith.truncf %150 : vector<8x128xf32> to vector<8x128xbf16>
    %c3_136 = arith.constant 3 : index
    %c0_137 = arith.constant 0 : index
    %c0_138 = arith.constant 0 : index
    %152 = vector.load %arg7[%c3_136, %c0_137, %c0_138] : memref<4x128x128xbf16, #tpu.memory_space<vmem>>, vector<1x128x128xbf16>
    %153 = vector.shape_cast %152 : vector<1x128x128xbf16> to vector<128x128xbf16>
    %cst_139 = arith.constant dense<0.000000e+00> : vector<8x128xf32>
    %154 = tpu.matmul %151, %153, %cst_139 {dimension_numbers = #tpu.dot_dimension_numbers<[1], [0], [0], [1], [0, 0, 1, 1], [], []>} : vector<8x128xbf16>, vector<128x128xbf16>, vector<8x128xf32> -> vector<8x128xf32>
    %c3_140 = arith.constant 3 : index
    %c0_141 = arith.constant 0 : index
    %c0_142 = arith.constant 0 : index
    %155 = vector.load %arg8[%c3_140, %c0_141, %c0_142] : memref<4x1x128xf32, #tpu.memory_space<vmem>>, vector<1x1x128xf32>
    %156 = vector.shape_cast %155 : vector<1x1x128xf32> to vector<1x128xf32>
    %157 = vector.broadcast %156 : vector<1x128xf32> to vector<8x128xf32>
    %158 = arith.addf %154, %157 : vector<8x128xf32>
    %159 = arith.addf %81, %158 : vector<8x128xf32>
    %160 = vector.broadcast %2 : vector<1x128xf32> to vector<8x128xf32>
    %161 = arith.mulf %120, %160 : vector<8x128xf32>
    %162 = vector.broadcast %3 : vector<1x128xf32> to vector<8x128xf32>
    %163 = arith.mulf %159, %162 : vector<8x128xf32>
    %c0_143 = arith.constant 0 : index
    %c0_144 = arith.constant 0 : index
    %164 = vector.load %arg11[%c0_143, %c0_144] : memref<8x128xf32, #tpu.memory_space<vmem>>, vector<8x128xf32>
    tpu.vector_store %arg11[%c0_143, %c0_144], %161 {strides = array<i32>} : memref<8x128xf32, #tpu.memory_space<vmem>>, vector<8x128xf32>,
    %c0_145 = arith.constant 0 : index
    %c0_146 = arith.constant 0 : index
    %165 = vector.load %arg12[%c0_145, %c0_146] : memref<8x128xf32, #tpu.memory_space<vmem>>, vector<8x128xf32>
    tpu.vector_store %arg12[%c0_145, %c0_146], %163 {strides = array<i32>} : memref<8x128xf32, #tpu.memory_space<vmem>>, vector<8x128xf32>,
    %cst_147 = arith.constant -5.000000e-01 : f32
    %166 = vector.broadcast %cst_147 : f32 to vector<8x128xf32>
    %167 = arith.mulf %166, %161 : vector<8x128xf32>
    %168 = arith.mulf %167, %161 : vector<8x128xf32>
    %cst_148 = arith.constant dense<0.000000e+00> : vector<8xf32>
    %169 = vector.multi_reduction <add>, %168, %cst_148 [1] : vector<8x128xf32> to vector<8xf32>
    %170 = vector.shape_cast %169 : vector<8xf32> to vector<8x1xf32>
    %cst_149 = arith.constant -5.000000e-01 : f32
    %171 = vector.broadcast %cst_149 : f32 to vector<8x128xf32>
    %172 = arith.mulf %171, %163 : vector<8x128xf32>
    %173 = arith.mulf %172, %163 : vector<8x128xf32>
    %cst_150 = arith.constant dense<0.000000e+00> : vector<8xf32>
    %174 = vector.multi_reduction <add>, %173, %cst_150 [1] : vector<8x128xf32> to vector<8xf32>
    %175 = vector.shape_cast %174 : vector<8xf32> to vector<8x1xf32>
    %176 = arith.addf %170, %175 : vector<8x1xf32>
    %cst_151 = arith.constant 14.7030163 : f32
    %177 = vector.broadcast %cst_151 : f32 to vector<8x1xf32>
    %178 = arith.subf %176, %177 : vector<8x1xf32>
    %179 = vector.shape_cast %178 : vector<8x1xf32> to vector<8x1xf32>
    %180 = vector.broadcast %179 : vector<8x1xf32> to vector<8x128xf32>
    %c0_152 = arith.constant 0 : index
    %c0_153 = arith.constant 0 : index
    %181 = vector.load %arg13[%c0_152, %c0_153] : memref<8x128xf32, #tpu.memory_space<vmem>>, vector<8x128xf32>
    tpu.vector_store %arg13[%c0_152, %c0_153], %180 {strides = array<i32>} : memref<8x128xf32, #tpu.memory_space<vmem>>, vector<8x128xf32>,
    return
  }
  func.func @transform_0(%arg0: i32) -> (i32, i32) {
    %c0_i32 = arith.constant 0 : i32
    %c0_i32_0 = arith.constant 0 : i32
    return %arg0, %c0_i32 : i32, i32
  }
  func.func @transform_1(%arg0: i32) -> (i32, i32) {
    %c0_i32 = arith.constant 0 : i32
    %c0_i32_0 = arith.constant 0 : i32
    return %arg0, %c0_i32 : i32, i32
  }
  func.func @transform_2(%arg0: i32) -> (i32, i32, i32) {
    %c0_i32 = arith.constant 0 : i32
    %c0_i32_0 = arith.constant 0 : i32
    %c0_i32_1 = arith.constant 0 : i32
    %c0_i32_2 = arith.constant 0 : i32
    return %c0_i32, %c0_i32_0, %c0_i32_1 : i32, i32, i32
  }
  func.func @transform_3(%arg0: i32) -> (i32, i32, i32) {
    %c0_i32 = arith.constant 0 : i32
    %c0_i32_0 = arith.constant 0 : i32
    %c0_i32_1 = arith.constant 0 : i32
    %c0_i32_2 = arith.constant 0 : i32
    return %c0_i32, %c0_i32_0, %c0_i32_1 : i32, i32, i32
  }
  func.func @transform_4(%arg0: i32) -> (i32, i32, i32, i32) {
    %c0_i32 = arith.constant 0 : i32
    %c0_i32_0 = arith.constant 0 : i32
    %c0_i32_1 = arith.constant 0 : i32
    %c0_i32_2 = arith.constant 0 : i32
    %c0_i32_3 = arith.constant 0 : i32
    return %c0_i32, %c0_i32_0, %c0_i32_1, %c0_i32_2 : i32, i32, i32, i32
  }
  func.func @transform_5(%arg0: i32) -> (i32, i32, i32, i32) {
    %c0_i32 = arith.constant 0 : i32
    %c0_i32_0 = arith.constant 0 : i32
    %c0_i32_1 = arith.constant 0 : i32
    %c0_i32_2 = arith.constant 0 : i32
    %c0_i32_3 = arith.constant 0 : i32
    return %c0_i32, %c0_i32_0, %c0_i32_1, %c0_i32_2 : i32, i32, i32, i32
  }
  func.func @transform_6(%arg0: i32) -> (i32, i32, i32) {
    %c0_i32 = arith.constant 0 : i32
    %c0_i32_0 = arith.constant 0 : i32
    %c0_i32_1 = arith.constant 0 : i32
    %c0_i32_2 = arith.constant 0 : i32
    return %c0_i32, %c0_i32_0, %c0_i32_1 : i32, i32, i32
  }
  func.func @transform_7(%arg0: i32) -> (i32, i32, i32) {
    %c0_i32 = arith.constant 0 : i32
    %c0_i32_0 = arith.constant 0 : i32
    %c0_i32_1 = arith.constant 0 : i32
    %c0_i32_2 = arith.constant 0 : i32
    return %c0_i32, %c0_i32_0, %c0_i32_1 : i32, i32, i32
  }
  func.func @transform_8(%arg0: i32) -> (i32, i32) {
    %c0_i32 = arith.constant 0 : i32
    %c0_i32_0 = arith.constant 0 : i32
    %c0_i32_1 = arith.constant 0 : i32
    return %c0_i32, %c0_i32_0 : i32, i32
  }
  func.func @transform_9(%arg0: i32) -> (i32, i32) {
    %c0_i32 = arith.constant 0 : i32
    %c0_i32_0 = arith.constant 0 : i32
    %c0_i32_1 = arith.constant 0 : i32
    return %c0_i32, %c0_i32_0 : i32, i32
  }
  func.func @transform_10(%arg0: i32) -> (i32, i32) {
    %c0_i32 = arith.constant 0 : i32
    %c0_i32_0 = arith.constant 0 : i32
    return %arg0, %c0_i32 : i32, i32
  }
  func.func @transform_11(%arg0: i32) -> (i32, i32) {
    %c0_i32 = arith.constant 0 : i32
    %c0_i32_0 = arith.constant 0 : i32
    return %arg0, %c0_i32 : i32, i32
  }
  func.func @transform_12(%arg0: i32) -> (i32, i32) {
    %c0_i32 = arith.constant 0 : i32
    %c0_i32_0 = arith.constant 0 : i32
    return %arg0, %c0_i32 : i32, i32
  }
}

</mosaic_0001>

<llo_original>
// kernel: nice_apply.1
$region0: #{nice_apply.1}
  #allocation0 [shape = 'u32[]', space=smem, size = 0x4, offset = 0x4, fixed_abs, tag = 'smem constant byte address 0x4 - core index']
  #allocation1 [shape = 'u32[144,128]{1,0:T(1,128)}', space=vmem, size = 0x12000, scoped, tag = 'internal scratch']
  %s0 = inlined_call_operand.vmem [shape: f32[16,128], index: 0, kind: input, shape index: {}]
  %s1 = inlined_call_operand.vmem [shape: f32[16,128], index: 1, kind: input, shape index: {}]
  %s2 = inlined_call_operand.vmem [shape: bf16[4,128,128], index: 2, kind: input, shape index: {}]
  %s3 = inlined_call_operand.vmem [shape: f32[4,1,128], index: 3, kind: input, shape index: {}]
  %s4 = inlined_call_operand.vmem [shape: bf16[4,2,128,128], index: 4, kind: input, shape index: {}]
  %s5 = inlined_call_operand.vmem [shape: f32[4,2,1,128], index: 5, kind: input, shape index: {}]
  %s6 = inlined_call_operand.vmem [shape: bf16[4,128,128], index: 6, kind: input, shape index: {}]
  %s7 = inlined_call_operand.vmem [shape: f32[4,1,128], index: 7, kind: input, shape index: {}]
  %s8 = inlined_call_operand.vmem [shape: f32[1,128], index: 8, kind: input, shape index: {}]
  %s9 = inlined_call_operand.vmem [shape: f32[1,128], index: 9, kind: input, shape index: {}]
  %s10 = inlined_call_operand.vmem [shape: f32[16,128], index: 10, kind: output, shape index: {0}]
  %s11 = inlined_call_operand.vmem [shape: f32[16,128], index: 11, kind: output, shape index: {1}]
  %s12 = inlined_call_operand.vmem [shape: f32[16,128], index: 12, kind: output, shape index: {2}]
  %13 = xla_tuple %s10, %s11, %s12
  %s14 = sld [smem:[#allocation0]]
  $region89: #{nice_apply.1} parent=0
    _
  %s16 = ssub.s32 1, %s14
  %s17 = scalar_select 0, %s16, %s14
  loop: start=0, step=1, limit=4
  $region2: #{nice_apply.1} parent=0 // loop_pre_header
    _
  $region3: #{nice_apply.1} parent=0 // loop_header
    %s19 = sphi 0, %s23
    %p20 = scmp.ge.s32.totalorder %s19, 4
    %s29 = sphi 0, %s31
    %s32 = sphi 0, %s29
    %s33 = sphi 0, %s32
    %s49 = sphi 0, %s33
    %s55 = sphi 0, %s57
    %s58 = sphi 0, %s55
    %s59 = sphi 0, %s58
    %s75 = sphi 0, %s59
    %s79 = sphi 0, %s79
    %s81 = sphi 0, %s79
    %s82 = sphi 0, %s81
    %s96 = sphi 0, %s82
    %s100 = sphi 0, %s100
    %s102 = sphi 0, %s100
    %s103 = sphi 0, %s102
    %s117 = sphi 0, %s103
    %s121 = sphi 0, %s121
    %s123 = sphi 0, %s121
    %s124 = sphi 0, %s123
    %s138 = sphi 0, %s124
    %s142 = sphi 0, %s142
    %s144 = sphi 0, %s142
    %s145 = sphi 0, %s144
    %s159 = sphi 0, %s145
    %s163 = sphi 0, %s163
    %s165 = sphi 0, %s163
    %s166 = sphi 0, %s165
    %s180 = sphi 0, %s166
    %s184 = sphi 0, %s184
    %s186 = sphi 0, %s184
    %s187 = sphi 0, %s186
    %s201 = sphi 0, %s187
    %s205 = sphi 0, %s205
    %s207 = sphi 0, %s205
    %s208 = sphi 0, %s207
    %s222 = sphi 0, %s208
    %s226 = sphi 0, %s226
    %s228 = sphi 0, %s226
    %s229 = sphi 0, %s228
    %s243 = sphi 0, %s229
    %s249 = sphi 0, %s251
    %s252 = sphi 0, %s249
    %s253 = sphi 0, %s252
    %s269 = sphi 0, %s253
    %s275 = sphi 0, %s277
    %s278 = sphi 0, %s275
    %s279 = sphi 0, %s278
    %s295 = sphi 0, %s279
    %s301 = sphi 0, %s303
    %s304 = sphi 0, %s301
    %s305 = sphi 0, %s304
    %s321 = sphi 0, %s305
  $region4: #{nice_apply.1} parent=0 // loop_header_branch
    %22 = sbr.rel (%p20) target = $region8
  $region5: #{nice_apply.1} parent=0 // loop_body
    %s24 = ssub.s32 %s19, 1
    %s25 = ssub.s32 %s19, 2
    %s26 = sadd.s32 %s19, 1
    %s27 = ssub.s32 %s19, %s26
    %p28 = scmp.eq.s32.totalorder %s27, 0
    %s30 = sadd.s32 %s29, 1
    %s31 = scalar_select %p28, %s29, %s30
    %p34 = pneg %p28
    %p35 = scmp.eq.s32.totalorder %s19, 1
    %p36 = por %p34, %p35
    %p37 = scmp.ne.s32.totalorder %s29, %s32
    %p38 = scmp.eq.s32.totalorder %s19, 0
    %p39 = por %p37, %p38
    %p40 = scmp.ne.s32.totalorder %s29, %s32
    %p41 = scmp.eq.s32.totalorder %s24, 1
    %p42 = por %p40, %p41
    %p43 = scmp.ne.s32.totalorder %s32, %s33
    %p44 = scmp.eq.s32.totalorder %s24, 0
    %p45 = por %p43, %p44
    %p46 = scmp.ne.s32.totalorder %s32, %s33
    %p47 = scmp.eq.s32.totalorder %s25, 1
    %p48 = por %p46, %p47
    %p50 = scmp.ne.s32.totalorder %s33, %s49
    %p51 = scmp.eq.s32.totalorder %s25, 0
    %p52 = por %p50, %p51
    %s53 = ssub.s32 %s19, %s26
    %p54 = scmp.eq.s32.totalorder %s53, 0
    %s56 = sadd.s32 %s55, 1
    %s57 = scalar_select %p54, %s55, %s56
    %p60 = pneg %p54
    %p61 = scmp.eq.s32.totalorder %s19, 1
    %p62 = por %p60, %p61
    %p63 = scmp.ne.s32.totalorder %s55, %s58
    %p64 = scmp.eq.s32.totalorder %s19, 0
    %p65 = por %p63, %p64
    %p66 = scmp.ne.s32.totalorder %s55, %s58
    %p67 = scmp.eq.s32.totalorder %s24, 1
    %p68 = por %p66, %p67
    %p69 = scmp.ne.s32.totalorder %s58, %s59
    %p70 = scmp.eq.s32.totalorder %s24, 0
    %p71 = por %p69, %p70
    %p72 = scmp.ne.s32.totalorder %s58, %s59
    %p73 = scmp.eq.s32.totalorder %s25, 1
    %p74 = por %p72, %p73
    %p76 = scmp.ne.s32.totalorder %s59, %s75
    %p77 = scmp.eq.s32.totalorder %s25, 0
    %p78 = por %p76, %p77
    %s80 = sadd.s32 %s79, 1
    %p83 = scmp.eq.s32.totalorder %s19, 1
    %p84 = scmp.ne.s32.totalorder %s79, %s81
    %p85 = scmp.eq.s32.totalorder %s19, 0
    %p86 = por %p84, %p85
    %p87 = scmp.ne.s32.totalorder %s79, %s81
    %p88 = scmp.eq.s32.totalorder %s24, 1
    %p89 = por %p87, %p88
    %p90 = scmp.ne.s32.totalorder %s81, %s82
    %p91 = scmp.eq.s32.totalorder %s24, 0
    %p92 = por %p90, %p91
    %p93 = scmp.ne.s32.totalorder %s81, %s82
    %p94 = scmp.eq.s32.totalorder %s25, 1
    %p95 = por %p93, %p94
    %p97 = scmp.ne.s32.totalorder %s82, %s96
    %p98 = scmp.eq.s32.totalorder %s25, 0
    %p99 = por %p97, %p98
    %s101 = sadd.s32 %s100, 1
    %p104 = scmp.eq.s32.totalorder %s19, 1
    %p105 = scmp.ne.s32.totalorder %s100, %s102
    %p106 = scmp.eq.s32.totalorder %s19, 0
    %p107 = por %p105, %p106
    %p108 = scmp.ne.s32.totalorder %s100, %s102
    %p109 = scmp.eq.s32.totalorder %s24, 1
    %p110 = por %p108, %p109
    %p111 = scmp.ne.s32.totalorder %s102, %s103
    %p112 = scmp.eq.s32.totalorder %s24, 0
    %p113 = por %p111, %p112
    %p114 = scmp.ne.s32.totalorder %s102, %s103
    %p115 = scmp.eq.s32.totalorder %s25, 1
    %p116 = por %p114, %p115
    %p118 = scmp.ne.s32.totalorder %s103, %s117
    %p119 = scmp.eq.s32.totalorder %s25, 0
    %p120 = por %p118, %p119
    %s122 = sadd.s32 %s121, 1
    %p125 = scmp.eq.s32.totalorder %s19, 1
    %p126 = scmp.ne.s32.totalorder %s121, %s123
    %p127 = scmp.eq.s32.totalorder %s19, 0
    %p128 = por %p126, %p127
    %p129 = scmp.ne.s32.totalorder %s121, %s123
    %p130 = scmp.eq.s32.totalorder %s24, 1
    %p131 = por %p129, %p130
    %p132 = scmp.ne.s32.totalorder %s123, %s124
    %p133 = scmp.eq.s32.totalorder %s24, 0
    %p134 = por %p132, %p133
    %p135 = scmp.ne.s32.totalorder %s123, %s124
    %p136 = scmp.eq.s32.totalorder %s25, 1
    %p137 = por %p135, %p136
    %p139 = scmp.ne.s32.totalorder %s124, %s138
    %p140 = scmp.eq.s32.totalorder %s25, 0
    %p141 = por %p139, %p140
    %s143 = sadd.s32 %s142, 1
    %p146 = scmp.eq.s32.totalorder %s19, 1
    %p147 = scmp.ne.s32.totalorder %s142, %s144
    %p148 = scmp.eq.s32.totalorder %s19, 0
    %p149 = por %p147, %p148
    %p150 = scmp.ne.s32.totalorder %s142, %s144
    %p151 = scmp.eq.s32.totalorder %s24, 1
    %p152 = por %p150, %p151
    %p153 = scmp.ne.s32.totalorder %s144, %s145
    %p154 = scmp.eq.s32.totalorder %s24, 0
    %p155 = por %p153, %p154
    %p156 = scmp.ne.s32.totalorder %s144, %s145
    %p157 = scmp.eq.s32.totalorder %s25, 1
    %p158 = por %p156, %p157
    %p160 = scmp.ne.s32.totalorder %s145, %s159
    %p161 = scmp.eq.s32.totalorder %s25, 0
    %p162 = por %p160, %p161
    %s164 = sadd.s32 %s163, 1
    %p167 = scmp.eq.s32.totalorder %s19, 1
    %p168 = scmp.ne.s32.totalorder %s163, %s165
    %p169 = scmp.eq.s32.totalorder %s19, 0
    %p170 = por %p168, %p169
    %p171 = scmp.ne.s32.totalorder %s163, %s165
    %p172 = scmp.eq.s32.totalorder %s24, 1
    %p173 = por %p171, %p172
    %p174 = scmp.ne.s32.totalorder %s165, %s166
    %p175 = scmp.eq.s32.totalorder %s24, 0
    %p176 = por %p174, %p175
    %p177 = scmp.ne.s32.totalorder %s165, %s166
    %p178 = scmp.eq.s32.totalorder %s25, 1
    %p179 = por %p177, %p178
    %p181 = scmp.ne.s32.totalorder %s166, %s180
    %p182 = scmp.eq.s32.totalorder %s25, 0
    %p183 = por %p181, %p182
    %s185 = sadd.s32 %s184, 1
    %p188 = scmp.eq.s32.totalorder %s19, 1
    %p189 = scmp.ne.s32.totalorder %s184, %s186
    %p190 = scmp.eq.s32.totalorder %s19, 0
    %p191 = por %p189, %p190
    %p192 = scmp.ne.s32.totalorder %s184, %s186
    %p193 = scmp.eq.s32.totalorder %s24, 1
    %p194 = por %p192, %p193
    %p195 = scmp.ne.s32.totalorder %s186, %s187
    %p196 = scmp.eq.s32.totalorder %s24, 0
    %p197 = por %p195, %p196
    %p198 = scmp.ne.s32.totalorder %s186, %s187
    %p199 = scmp.eq.s32.totalorder %s25, 1
    %p200 = por %p198, %p199
    %p202 = scmp.ne.s32.totalorder %s187, %s201
    %p203 = scmp.eq.s32.totalorder %s25, 0
    %p204 = por %p202, %p203
    %s206 = sadd.s32 %s205, 1
    %p209 = scmp.eq.s32.totalorder %s19, 1
    %p210 = scmp.ne.s32.totalorder %s205, %s207
    %p211 = scmp.eq.s32.totalorder %s19, 0
    %p212 = por %p210, %p211
    %p213 = scmp.ne.s32.totalorder %s205, %s207
    %p214 = scmp.eq.s32.totalorder %s24, 1
    %p215 = por %p213, %p214
    %p216 = scmp.ne.s32.totalorder %s207, %s208
    %p217 = scmp.eq.s32.totalorder %s24, 0
    %p218 = por %p216, %p217
    %p219 = scmp.ne.s32.totalorder %s207, %s208
    %p220 = scmp.eq.s32.totalorder %s25, 1
    %p221 = por %p219, %p220
    %p223 = scmp.ne.s32.totalorder %s208, %s222
    %p224 = scmp.eq.s32.totalorder %s25, 0
    %p225 = por %p223, %p224
    %s227 = sadd.s32 %s226, 1
    %p230 = scmp.eq.s32.totalorder %s19, 1
    %p231 = scmp.ne.s32.totalorder %s226, %s228
    %p232 = scmp.eq.s32.totalorder %s19, 0
    %p233 = por %p231, %p232
    %p234 = scmp.ne.s32.totalorder %s226, %s228
    %p235 = scmp.eq.s32.totalorder %s24, 1
    %p236 = por %p234, %p235
    %p237 = scmp.ne.s32.totalorder %s228, %s229
    %p238 = scmp.eq.s32.totalorder %s24, 0
    %p239 = por %p237, %p238
    %p240 = scmp.ne.s32.totalorder %s228, %s229
    %p241 = scmp.eq.s32.totalorder %s25, 1
    %p242 = por %p240, %p241
    %p244 = scmp.ne.s32.totalorder %s229, %s243
    %p245 = scmp.eq.s32.totalorder %s25, 0
    %p246 = por %p244, %p245
    %s247 = ssub.s32 %s19, %s26
    %p248 = scmp.eq.s32.totalorder %s247, 0
    %s250 = sadd.s32 %s249, 1
    %s251 = scalar_select %p248, %s249, %s250
    %p254 = pneg %p248
    %p255 = scmp.eq.s32.totalorder %s19, 1
    %p256 = por %p254, %p255
    %p257 = scmp.ne.s32.totalorder %s249, %s252
    %p258 = scmp.eq.s32.totalorder %s19, 0
    %p259 = por %p257, %p258
    %p260 = scmp.ne.s32.totalorder %s249, %s252
    %p261 = scmp.eq.s32.totalorder %s24, 1
    %p262 = por %p260, %p261
    %p263 = scmp.ne.s32.totalorder %s252, %s253
    %p264 = scmp.eq.s32.totalorder %s24, 0
    %p265 = por %p263, %p264
    %p266 = scmp.ne.s32.totalorder %s252, %s253
    %p267 = scmp.eq.s32.totalorder %s25, 1
    %p268 = por %p266, %p267
    %p270 = scmp.ne.s32.totalorder %s253, %s269
    %p271 = scmp.eq.s32.totalorder %s25, 0
    %p272 = por %p270, %p271
    %s273 = ssub.s32 %s19, %s26
    %p274 = scmp.eq.s32.totalorder %s273, 0
    %s276 = sadd.s32 %s275, 1
    %s277 = scalar_select %p274, %s275, %s276
    %p280 = pneg %p274
    %p281 = scmp.eq.s32.totalorder %s19, 1
    %p282 = por %p280, %p281
    %p283 = scmp.ne.s32.totalorder %s275, %s278
    %p284 = scmp.eq.s32.totalorder %s19, 0
    %p285 = por %p283, %p284
    %p286 = scmp.ne.s32.totalorder %s275, %s278
    %p287 = scmp.eq.s32.totalorder %s24, 1
    %p288 = por %p286, %p287
    %p289 = scmp.ne.s32.totalorder %s278, %s279
    %p290 = scmp.eq.s32.totalorder %s24, 0
    %p291 = por %p289, %p290
    %p292 = scmp.ne.s32.totalorder %s278, %s279
    %p293 = scmp.eq.s32.totalorder %s25, 1
    %p294 = por %p292, %p293
    %p296 = scmp.ne.s32.totalorder %s279, %s295
    %p297 = scmp.eq.s32.totalorder %s25, 0
    %p298 = por %p296, %p297
    %s299 = ssub.s32 %s19, %s26
    %p300 = scmp.eq.s32.totalorder %s299, 0
    %s302 = sadd.s32 %s301, 1
    %s303 = scalar_select %p300, %s301, %s302
    %p306 = pneg %p300
    %p307 = scmp.eq.s32.totalorder %s19, 1
    %p308 = por %p306, %p307
    %p309 = scmp.ne.s32.totalorder %s301, %s304
    %p310 = scmp.eq.s32.totalorder %s19, 0
    %p311 = por %p309, %p310
    %p312 = scmp.ne.s32.totalorder %s301, %s304
    %p313 = scmp.eq.s32.totalorder %s24, 1
    %p314 = por %p312, %p313
    %p315 = scmp.ne.s32.totalorder %s304, %s305
    %p316 = scmp.eq.s32.totalorder %s24, 0
    %p317 = por %p315, %p316
    %p318 = scmp.ne.s32.totalorder %s304, %s305
    %p319 = scmp.eq.s32.totalorder %s25, 1
    %p320 = por %p318, %p319
    %p322 = scmp.ne.s32.totalorder %s305, %s321
    %p323 = scmp.eq.s32.totalorder %s25, 0
    %p324 = por %p322, %p323
    %p325 = scmp.le.s32.totalorder 1, %s19
    %p326 = scmp.lt.s32.totalorder %s19, 3
    %p327 = pnand %p325, %p326
    %p328 = pneg %p327
    // Predicated region
    $region9: #{nice_apply.1} parent=5 // pred_check
      _
    $region10: #{nice_apply.1} parent=5 // pred_check_branch
      %330 = sbr.rel (%p327) target = $region12
    $region11: #{nice_apply.1} parent=5 // pred_region
      %s331 = ssub.s32 %s19, 1
      // Predicated region
      $region13: #{nice_apply.1} parent=11 // pred_check
        %p332 = pneg %p92
      $region14: #{nice_apply.1} parent=11 // pred_check_branch
        %334 = sbr.rel (%p332) target = $region16
      $region15: #{nice_apply.1} parent=11 // pred_region
        _
      $region16: #{nice_apply.1} parent=11 // pred_fallthru
        _
      // Predicated region
      $region17: #{nice_apply.1} parent=11 // pred_check
        %p335 = pneg %p113
      $region18: #{nice_apply.1} parent=11 // pred_check_branch
        %337 = sbr.rel (%p335) target = $region20
      $region19: #{nice_apply.1} parent=11 // pred_region
        _
      $region20: #{nice_apply.1} parent=11 // pred_fallthru
        _
      // Predicated region
      $region21: #{nice_apply.1} parent=11 // pred_check
        %p338 = pneg %p134
      $region22: #{nice_apply.1} parent=11 // pred_check_branch
        %340 = sbr.rel (%p338) target = $region24
      $region23: #{nice_apply.1} parent=11 // pred_region
        _
      $region24: #{nice_apply.1} parent=11 // pred_fallthru
        _
      // Predicated region
      $region25: #{nice_apply.1} parent=11 // pred_check
        %p341 = pneg %p155
      $region26: #{nice_apply.1} parent=11 // pred_check_branch
        %343 = sbr.rel (%p341) target = $region28
      $region27: #{nice_apply.1} parent=11 // pred_region
        _
      $region28: #{nice_apply.1} parent=11 // pred_fallthru
        _
      // Predicated region
      $region29: #{nice_apply.1} parent=11 // pred_check
        %p344 = pneg %p176
      $region30: #{nice_apply.1} parent=11 // pred_check_branch
        %346 = sbr.rel (%p344) target = $region32
      $region31: #{nice_apply.1} parent=11 // pred_region
        _
      $region32: #{nice_apply.1} parent=11 // pred_fallthru
        _
      // Predicated region
      $region33: #{nice_apply.1} parent=11 // pred_check
        %p347 = pneg %p197
      $region34: #{nice_apply.1} parent=11 // pred_check_branch
        %349 = sbr.rel (%p347) target = $region36
      $region35: #{nice_apply.1} parent=11 // pred_region
        _
      $region36: #{nice_apply.1} parent=11 // pred_fallthru
        _
      // Predicated region
      $region37: #{nice_apply.1} parent=11 // pred_check
        %p350 = pneg %p218
      $region38: #{nice_apply.1} parent=11 // pred_check_branch
        %352 = sbr.rel (%p350) target = $region40
      $region39: #{nice_apply.1} parent=11 // pred_region
        _
      $region40: #{nice_apply.1} parent=11 // pred_fallthru
        _
      // Predicated region
      $region41: #{nice_apply.1} parent=11 // pred_check
        %p353 = pneg %p239
      $region42: #{nice_apply.1} parent=11 // pred_check_branch
        %355 = sbr.rel (%p353) target = $region44
      $region43: #{nice_apply.1} parent=11 // pred_region
        _
      $region44: #{nice_apply.1} parent=11 // pred_fallthru
        _
    $region12: #{nice_apply.1} parent=5 // pred_fallthru
      _
    %p356 = scmp.lt.s32.totalorder %s19, 2
    // Predicated region
    $region45: #{nice_apply.1} parent=5 // pred_check
      %p357 = pneg %p356
    $region46: #{nice_apply.1} parent=5 // pred_check_branch
      %359 = sbr.rel (%p357) target = $region48
    $region47: #{nice_apply.1} parent=5 // pred_region
      // Predicated region
      $region49: #{nice_apply.1} parent=47 // pred_check
        %p360 = pneg %p39
      $region50: #{nice_apply.1} parent=47 // pred_check_branch
        %362 = sbr.rel (%p360) target = $region52
      $region51: #{nice_apply.1} parent=47 // pred_region
        %p363 = scmp.lt.s32.totalorder %s19, 1
        %s364 = scalar_select %p363, %s19, 1
        %s365 = smul.addr %s364, 8
        %s366 = scalar_lea.vmem %s0, %s365
      $region52: #{nice_apply.1} parent=47 // pred_fallthru
        _
      // Predicated region
      $region53: #{nice_apply.1} parent=47 // pred_check
        %p367 = pneg %p65
      $region54: #{nice_apply.1} parent=47 // pred_check_branch
        %369 = sbr.rel (%p367) target = $region56
      $region55: #{nice_apply.1} parent=47 // pred_region
        %p370 = scmp.lt.s32.totalorder %s19, 1
        %s371 = scalar_select %p370, %s19, 1
        %s372 = smul.addr %s371, 8
        %s373 = scalar_lea.vmem %s1, %s372
      $region56: #{nice_apply.1} parent=47 // pred_fallthru
        _
    $region48: #{nice_apply.1} parent=5 // pred_fallthru
      _
    %p374 = scmp.le.s32.totalorder 1, %s19
    %p375 = scmp.lt.s32.totalorder %s19, 3
    %p376 = pnand %p374, %p375
    %p377 = pneg %p376
    // Predicated region
    $region57: #{nice_apply.1} parent=5 // pred_check
      _
    $region58: #{nice_apply.1} parent=5 // pred_check_branch
      %379 = sbr.rel (%p376) target = $region60
    $region59: #{nice_apply.1} parent=5 // pred_region
      %s380 = ssub.s32 %s19, 1
      %p381 = scmp.lt.s32.totalorder %s24, 1
      %s382 = scalar_select %p381, %s24, 1
      %s383 = smul.addr %s382, 8
      %s384 = scalar_lea.vmem %s0, %s383
      %p385 = pneg %p45
      %p386 = pneg %p42
      %p387 = scmp.lt.s32.totalorder %s24, 1
      %s388 = scalar_select %p387, %s24, 1
      %s389 = smul.addr %s388, 8
      %s390 = scalar_lea.vmem %s1, %s389
      %p391 = pneg %p71
      %p392 = pneg %p68
      %p393 = pneg %p92
      %p394 = pneg %p89
      %p395 = pneg %p113
      %p396 = pneg %p110
      %p397 = pneg %p134
      %p398 = pneg %p131
      %p399 = pneg %p155
      %p400 = pneg %p152
      %p401 = pneg %p176
      %p402 = pneg %p173
      %p403 = pneg %p197
      %p404 = pneg %p194
      %p405 = pneg %p218
      %p406 = pneg %p215
      %p407 = pneg %p239
      %p408 = pneg %p236
      %p409 = pneg %p265
      %p410 = pneg %p262
      %p411 = scmp.lt.s32.totalorder %s24, 1
      %s412 = scalar_select %p411, %s24, 1
      %s413 = smul.addr %s412, 8
      %s414 = scalar_lea.vmem %s10, %s413
      %p415 = pneg %p291
      %p416 = pneg %p288
      %p417 = scmp.lt.s32.totalorder %s24, 1
      %s418 = scalar_select %p417, %s24, 1
      %s419 = smul.addr %s418, 8
      %s420 = scalar_lea.vmem %s11, %s419
      %p421 = pneg %p317
      %p422 = pneg %p314
      %p423 = scmp.lt.s32.totalorder %s24, 1
      %s424 = scalar_select %p423, %s24, 1
      %s425 = smul.addr %s424, 8
      %s426 = scalar_lea.vmem %s12, %s425
      %p427 = scmp.lt.s32.totalorder %s24, 1
      %s428 = scalar_select %p427, %s24, 1
      %s429 = smul.addr %s428, 8
      %s430 = scalar_lea.vmem %s0, %s429
      %p431 = scmp.lt.s32.totalorder %s24, 1
      %s432 = scalar_select %p431, %s24, 1
      %s433 = smul.addr %s432, 8
      %s434 = scalar_lea.vmem %s1, %s433
      %p435 = scmp.lt.s32.totalorder %s24, 1
      %s436 = scalar_select %p435, %s24, 1
      %s437 = smul.addr %s436, 8
      %s438 = scalar_lea.vmem %s10, %s437
      %p439 = scmp.lt.s32.totalorder %s24, 1
      %s440 = scalar_select %p439, %s24, 1
      %s441 = smul.addr %s440, 8
      %s442 = scalar_lea.vmem %s11, %s441
      %p443 = scmp.lt.s32.totalorder %s24, 1
      %s444 = scalar_select %p443, %s24, 1
      %s445 = smul.addr %s444, 8
      %s446 = scalar_lea.vmem %s12, %s445
      %v448 = vld [vmem:[%s430] sm:$0xff]
      %v449 = vld [vmem:[%s434] sm:$0xff]
      %v450 = vld [vmem:[%s8] sm:$0x1]
      %v451 = vld [vmem:[%s9] sm:$0x1]
      %v452 = vpack.c.bf16 %v449, %v449
      %v453 = vld [vmem:[%s2] sm:$0xf]
      %v454 = vld [vmem:[%s2 + $0x4] sm:$0xf]
      %v455 = vld [vmem:[%s2 + $0x8] sm:$0xf]
      %v456 = vld [vmem:[%s2 + $0xc] sm:$0xf]
      %v457 = vld [vmem:[%s2 + $0x10] sm:$0xf]
      %v458 = vld [vmem:[%s2 + $0x14] sm:$0xf]
      %v459 = vld [vmem:[%s2 + $0x18] sm:$0xf]
      %v460 = vld [vmem:[%s2 + $0x1c] sm:$0xf]
      %v461 = vld [vmem:[%s2 + $0x20] sm:$0xf]
      %v462 = vld [vmem:[%s2 + $0x24] sm:$0xf]
      %v463 = vld [vmem:[%s2 + $0x28] sm:$0xf]
      %v464 = vld [vmem:[%s2 + $0x2c] sm:$0xf]
      %v465 = vld [vmem:[%s2 + $0x30] sm:$0xf]
      %v466 = vld [vmem:[%s2 + $0x34] sm:$0xf]
      %v467 = vld [vmem:[%s2 + $0x38] sm:$0xf]
      %v468 = vld [vmem:[%s2 + $0x3c] sm:$0xf]
      %v469 = vld [vmem:[%s3] sm:$0x1]
      %v471 = vlaneseq
      %v472 = vshrl.u32 %v471, 7
      %v473 = vsub.s32 0, %v472
      %v474 = vrot.slane %v469, %v473
      %v492 = vunpack.c.l.b16 %v453
      %v493 = vunpack.c.l.b16 %v454
      %v494 = vunpack.c.l.b16 %v455
      %v495 = vunpack.c.l.b16 %v456
      %v496 = vunpack.c.l.b16 %v457
      %v497 = vunpack.c.l.b16 %v458
      %v498 = vunpack.c.l.b16 %v459
      %v499 = vunpack.c.l.b16 %v460
      %v500 = vunpack.c.l.b16 %v461
      %v501 = vunpack.c.l.b16 %v462
      %v502 = vunpack.c.l.b16 %v463
      %v503 = vunpack.c.l.b16 %v464
      %v504 = vunpack.c.l.b16 %v465
      %v505 = vunpack.c.l.b16 %v466
      %v506 = vunpack.c.l.b16 %v467
      %v507 = vunpack.c.l.b16 %v468
      %v508 = vpack.c.b16 %v493, %v492
      %v509 = vpack.c.b16 %v495, %v494
      %v510 = vpack.c.b16 %v497, %v496
      %v511 = vpack.c.b16 %v499, %v498
      %v512 = vpack.c.b16 %v501, %v500
      %v513 = vpack.c.b16 %v503, %v502
      %v514 = vpack.c.b16 %v505, %v504
      %v515 = vpack.c.b16 %v507, %v506
      %524 = vmatprep.subr.bf16.mxu0 0
      %525 = vmatpush1.bf16.msra.mxu0 %v515
      %526 = vmatprep.subr.bf16.mxu0 0
      %527 = vmatpush1.bf16.msra.mxu0 %v514
      %528 = vmatprep.subr.bf16.mxu0 0
      %529 = vmatpush1.bf16.msra.mxu0 %v513
      %530 = vmatprep.subr.bf16.mxu0 0
      %531 = vmatpush1.bf16.msra.mxu0 %v512
      %532 = vmatprep.subr.bf16.mxu0 0
      %533 = vmatpush1.bf16.msra.mxu0 %v511
      %534 = vmatprep.subr.bf16.mxu0 0
      %535 = vmatpush1.bf16.msra.mxu0 %v510
      %536 = vmatprep.subr.bf16.mxu0 0
      %537 = vmatpush1.bf16.msra.mxu0 %v509
      %538 = vmatprep.subr.bf16.mxu0 0
      %539 = vmatpush1.bf16.msra.mxu0 %v508
      %540 = vmatprep.subr.bf16.mxu0 0
      %541 = vmatpush2.bf16.msra.mxu0 0
      %542 = vmatprep.subr.bf16.mxu0 0
      %543 = vmatpush2.bf16.msra.mxu0 0
      %544 = vmatprep.subr.bf16.mxu0 0
      %545 = vmatpush2.bf16.msra.mxu0 0
      %546 = vmatprep.subr.bf16.mxu0 0
      %547 = vmatpush2.bf16.msra.mxu0 0
      %548 = vmatprep.subr.bf16.mxu0 0
      %549 = vmatpush2.bf16.msra.mxu0 0
      %550 = vmatprep.subr.bf16.mxu0 0
      %551 = vmatpush2.bf16.msra.mxu0 0
      %552 = vmatprep.subr.bf16.mxu0 0
      %553 = vmatpush2.bf16.msra.mxu0 0
      %554 = vmatprep.subr.bf16.mxu0 0
      %555 = vmatpush2.bf16.msra.mxu0 0
      %556 = vmatprep.mubr.bf16.mxu0 0
      %557 = vmatmul.mubr.bf16.gmra.mxu0 %v452
      %v558 = vpop.f32.mrf.mxu0
      %v559 = vadd.f32 %v474, %v558
      %v560 = vpop.f32.mrf.mxu0
      %v561 = vpop.f32.mrf.mxu0
      %v562 = vpop.f32.mrf.mxu0
      %563 = vdwg.mxu0
      %v564 = vmax.f32 %v559, 0.0
      %v565 = vpack.c.bf16 %v564, %v564
      %v566 = vld [vmem:[%s4] sm:$0xf]
      %v567 = vld [vmem:[%s4 + $0x4] sm:$0xf]
      %v568 = vld [vmem:[%s4 + $0x8] sm:$0xf]
      %v569 = vld [vmem:[%s4 + $0xc] sm:$0xf]
      %v570 = vld [vmem:[%s4 + $0x10] sm:$0xf]
      %v571 = vld [vmem:[%s4 + $0x14] sm:$0xf]
      %v572 = vld [vmem:[%s4 + $0x18] sm:$0xf]
      %v573 = vld [vmem:[%s4 + $0x1c] sm:$0xf]
      %v574 = vld [vmem:[%s4 + $0x20] sm:$0xf]
      %v575 = vld [vmem:[%s4 + $0x24] sm:$0xf]
      %v576 = vld [vmem:[%s4 + $0x28] sm:$0xf]
      %v577 = vld [vmem:[%s4 + $0x2c] sm:$0xf]
      %v578 = vld [vmem:[%s4 + $0x30] sm:$0xf]
      %v579 = vld [vmem:[%s4 + $0x34] sm:$0xf]
      %v580 = vld [vmem:[%s4 + $0x38] sm:$0xf]
      %v581 = vld [vmem:[%s4 + $0x3c] sm:$0xf]
      %v582 = vld [vmem:[%s5] sm:$0x1]
      %v584 = vlaneseq
      %v585 = vshrl.u32 %v584, 7
      %v586 = vsub.s32 0, %v585
      %v587 = vrot.slane %v582, %v586
      %v605 = vunpack.c.l.b16 %v566
      %v606 = vunpack.c.l.b16 %v567
      %v607 = vunpack.c.l.b16 %v568
      %v608 = vunpack.c.l.b16 %v569
      %v609 = vunpack.c.l.b16 %v570
      %v610 = vunpack.c.l.b16 %v571
      %v611 = vunpack.c.l.b16 %v572
      %v612 = vunpack.c.l.b16 %v573
      %v613 = vunpack.c.l.b16 %v574
      %v614 = vunpack.c.l.b16 %v575
      %v615 = vunpack.c.l.b16 %v576
      %v616 = vunpack.c.l.b16 %v577
      %v617 = vunpack.c.l.b16 %v578
      %v618 = vunpack.c.l.b16 %v579
      %v619 = vunpack.c.l.b16 %v580
      %v620 = vunpack.c.l.b16 %v581
      %v621 = vpack.c.b16 %v606, %v605
      %v622 = vpack.c.b16 %v608, %v607
      %v623 = vpack.c.b16 %v610, %v609
      %v624 = vpack.c.b16 %v612, %v611
      %v625 = vpack.c.b16 %v614, %v613
      %v626 = vpack.c.b16 %v616, %v615
      %v627 = vpack.c.b16 %v618, %v617
      %v628 = vpack.c.b16 %v620, %v619
      %637 = vmatprep.subr.bf16.mxu0 0
      %638 = vmatpush1.bf16.msra.mxu0 %v628
      %639 = vmatprep.subr.bf16.mxu0 0
      %640 = vmatpush1.bf16.msra.mxu0 %v627
      %641 = vmatprep.subr.bf16.mxu0 0
      %642 = vmatpush1.bf16.msra.mxu0 %v626
      %643 = vmatprep.subr.bf16.mxu0 0
      %644 = vmatpush1.bf16.msra.mxu0 %v625
      %645 = vmatprep.subr.bf16.mxu0 0
      %646 = vmatpush1.bf16.msra.mxu0 %v624
      %647 = vmatprep.subr.bf16.mxu0 0
      %648 = vmatpush1.bf16.msra.mxu0 %v623
      %649 = vmatprep.subr.bf16.mxu0 0
      %650 = vmatpush1.bf16.msra.mxu0 %v622
      %651 = vmatprep.subr.bf16.mxu0 0
      %652 = vmatpush1.bf16.msra.mxu0 %v621
      %653 = vmatprep.subr.bf16.mxu0 0
      %654 = vmatpush2.bf16.msra.mxu0 0
      %655 = vmatprep.subr.bf16.mxu0 0
      %656 = vmatpush2.bf16.msra.mxu0 0
      %657 = vmatprep.subr.bf16.mxu0 0
      %658 = vmatpush2.bf16.msra.mxu0 0
      %659 = vmatprep.subr.bf16.mxu0 0
      %660 = vmatpush2.bf16.msra.mxu0 0
      %661 = vmatprep.subr.bf16.mxu0 0
      %662 = vmatpush2.bf16.msra.mxu0 0
      %663 = vmatprep.subr.bf16.mxu0 0
      %664 = vmatpush2.bf16.msra.mxu0 0
      %665 = vmatprep.subr.bf16.mxu0 0
      %666 = vmatpush2.bf16.msra.mxu0 0
      %667 = vmatprep.subr.bf16.mxu0 0
      %668 = vmatpush2.bf16.msra.mxu0 0
      %669 = vmatprep.mubr.bf16.mxu0 0
      %670 = vmatmul.mubr.bf16.gmra.mxu0 %v565
      %v671 = vpop.f32.mrf.mxu0
      %v672 = vadd.f32 %v587, %v671
      %v673 = vpop.f32.mrf.mxu0
      %v674 = vpop.f32.mrf.mxu0
      %v675 = vpop.f32.mrf.mxu0
      %676 = vdwg.mxu0
      %v677 = vmax.f32 %v672, 0.0
      %v678 = vpack.c.bf16 %v677, %v677
      %s679 = scalar_lea.vmem %s4, 64
      %v680 = vld [vmem:[%s679] sm:$0xf]
      %v681 = vld [vmem:[%s679 + $0x4] sm:$0xf]
      %v682 = vld [vmem:[%s679 + $0x8] sm:$0xf]
      %v683 = vld [vmem:[%s679 + $0xc] sm:$0xf]
      %v684 = vld [vmem:[%s679 + $0x10] sm:$0xf]
      %v685 = vld [vmem:[%s679 + $0x14] sm:$0xf]
      %v686 = vld [vmem:[%s679 + $0x18] sm:$0xf]
      %v687 = vld [vmem:[%s679 + $0x1c] sm:$0xf]
      %v688 = vld [vmem:[%s679 + $0x20] sm:$0xf]
      %v689 = vld [vmem:[%s679 + $0x24] sm:$0xf]
      %v690 = vld [vmem:[%s679 + $0x28] sm:$0xf]
      %v691 = vld [vmem:[%s679 + $0x2c] sm:$0xf]
      %v692 = vld [vmem:[%s679 + $0x30] sm:$0xf]
      %v693 = vld [vmem:[%s679 + $0x34] sm:$0xf]
      %v694 = vld [vmem:[%s679 + $0x38] sm:$0xf]
      %v695 = vld [vmem:[%s679 + $0x3c] sm:$0xf]
      %s696 = scalar_lea.vmem %s5, 1
      %v697 = vld [vmem:[%s696] sm:$0x1]
      %v699 = vlaneseq
      %v700 = vshrl.u32 %v699, 7
      %v701 = vsub.s32 0, %v700
      %v702 = vrot.slane %v697, %v701
      %v720 = vunpack.c.l.b16 %v680
      %v721 = vunpack.c.l.b16 %v681
      %v722 = vunpack.c.l.b16 %v682
      %v723 = vunpack.c.l.b16 %v683
      %v724 = vunpack.c.l.b16 %v684
      %v725 = vunpack.c.l.b16 %v685
      %v726 = vunpack.c.l.b16 %v686
      %v727 = vunpack.c.l.b16 %v687
      %v728 = vunpack.c.l.b16 %v688
      %v729 = vunpack.c.l.b16 %v689
      %v730 = vunpack.c.l.b16 %v690
      %v731 = vunpack.c.l.b16 %v691
      %v732 = vunpack.c.l.b16 %v692
      %v733 = vunpack.c.l.b16 %v693
      %v734 = vunpack.c.l.b16 %v694
      %v735 = vunpack.c.l.b16 %v695
      %v736 = vpack.c.b16 %v721, %v720
      %v737 = vpack.c.b16 %v723, %v722
      %v738 = vpack.c.b16 %v725, %v724
      %v739 = vpack.c.b16 %v727, %v726
      %v740 = vpack.c.b16 %v729, %v728
      %v741 = vpack.c.b16 %v731, %v730
      %v742 = vpack.c.b16 %v733, %v732
      %v743 = vpack.c.b16 %v735, %v734
      %752 = vmatprep.subr.bf16.mxu0 0
      %753 = vmatpush1.bf16.msra.mxu0 %v743
      %754 = vmatprep.subr.bf16.mxu0 0
      %755 = vmatpush1.bf16.msra.mxu0 %v742
      %756 = vmatprep.subr.bf16.mxu0 0
      %757 = vmatpush1.bf16.msra.mxu0 %v741
      %758 = vmatprep.subr.bf16.mxu0 0
      %759 = vmatpush1.bf16.msra.mxu0 %v740
      %760 = vmatprep.subr.bf16.mxu0 0
      %761 = vmatpush1.bf16.msra.mxu0 %v739
      %762 = vmatprep.subr.bf16.mxu0 0
      %763 = vmatpush1.bf16.msra.mxu0 %v738
      %764 = vmatprep.subr.bf16.mxu0 0
      %765 = vmatpush1.bf16.msra.mxu0 %v737
      %766 = vmatprep.subr.bf16.mxu0 0
      %767 = vmatpush1.bf16.msra.mxu0 %v736
      %768 = vmatprep.subr.bf16.mxu0 0
      %769 = vmatpush2.bf16.msra.mxu0 0
      %770 = vmatprep.subr.bf16.mxu0 0
      %771 = vmatpush2.bf16.msra.mxu0 0
      %772 = vmatprep.subr.bf16.mxu0 0
      %773 = vmatpush2.bf16.msra.mxu0 0
      %774 = vmatprep.subr.bf16.mxu0 0
      %775 = vmatpush2.bf16.msra.mxu0 0
      %776 = vmatprep.subr.bf16.mxu0 0
      %777 = vmatpush2.bf16.msra.mxu0 0
      %778 = vmatprep.subr.bf16.mxu0 0
      %779 = vmatpush2.bf16.msra.mxu0 0
      %780 = vmatprep.subr.bf16.mxu0 0
      %781 = vmatpush2.bf16.msra.mxu0 0
      %782 = vmatprep.subr.bf16.mxu0 0
      %783 = vmatpush2.bf16.msra.mxu0 0
      %784 = vmatprep.mubr.bf16.mxu0 0
      %785 = vmatmul.mubr.bf16.gmra.mxu0 %v678
      %v786 = vpop.f32.mrf.mxu0
      %v787 = vadd.f32 %v702, %v786
      %v788 = vpop.f32.mrf.mxu0
      %v789 = vpop.f32.mrf.mxu0
      %v790 = vpop.f32.mrf.mxu0
      %791 = vdwg.mxu0
      %v792 = vmax.f32 %v787, 0.0
      %v793 = vpack.c.bf16 %v792, %v792
      %v794 = vld [vmem:[%s6] sm:$0xf]
      %v795 = vld [vmem:[%s6 + $0x4] sm:$0xf]
      %v796 = vld [vmem:[%s6 + $0x8] sm:$0xf]
      %v797 = vld [vmem:[%s6 + $0xc] sm:$0xf]
      %v798 = vld [vmem:[%s6 + $0x10] sm:$0xf]
      %v799 = vld [vmem:[%s6 + $0x14] sm:$0xf]
      %v800 = vld [vmem:[%s6 + $0x18] sm:$0xf]
      %v801 = vld [vmem:[%s6 + $0x1c] sm:$0xf]
      %v802 = vld [vmem:[%s6 + $0x20] sm:$0xf]
      %v803 = vld [vmem:[%s6 + $0x24] sm:$0xf]
      %v804 = vld [vmem:[%s6 + $0x28] sm:$0xf]
      %v805 = vld [vmem:[%s6 + $0x2c] sm:$0xf]
      %v806 = vld [vmem:[%s6 + $0x30] sm:$0xf]
      %v807 = vld [vmem:[%s6 + $0x34] sm:$0xf]
      %v808 = vld [vmem:[%s6 + $0x38] sm:$0xf]
      %v809 = vld [vmem:[%s6 + $0x3c] sm:$0xf]
      %v810 = vld [vmem:[%s7] sm:$0x1]
      %v812 = vlaneseq
      %v813 = vshrl.u32 %v812, 7
      %v814 = vsub.s32 0, %v813
      %v815 = vrot.slane %v810, %v814
      %v833 = vunpack.c.l.b16 %v794
      %v834 = vunpack.c.l.b16 %v795
      %v835 = vunpack.c.l.b16 %v796
      %v836 = vunpack.c.l.b16 %v797
      %v837 = vunpack.c.l.b16 %v798
      %v838 = vunpack.c.l.b16 %v799
      %v839 = vunpack.c.l.b16 %v800
      %v840 = vunpack.c.l.b16 %v801
      %v841 = vunpack.c.l.b16 %v802
      %v842 = vunpack.c.l.b16 %v803
      %v843 = vunpack.c.l.b16 %v804
      %v844 = vunpack.c.l.b16 %v805
      %v845 = vunpack.c.l.b16 %v806
      %v846 = vunpack.c.l.b16 %v807
      %v847 = vunpack.c.l.b16 %v808
      %v848 = vunpack.c.l.b16 %v809
      %v849 = vpack.c.b16 %v834, %v833
      %v850 = vpack.c.b16 %v836, %v835
      %v851 = vpack.c.b16 %v838, %v837
      %v852 = vpack.c.b16 %v840, %v839
      %v853 = vpack.c.b16 %v842, %v841
      %v854 = vpack.c.b16 %v844, %v843
      %v855 = vpack.c.b16 %v846, %v845
      %v856 = vpack.c.b16 %v848, %v847
      %865 = vmatprep.subr.bf16.mxu0 0
      %866 = vmatpush1.bf16.msra.mxu0 %v856
      %867 = vmatprep.subr.bf16.mxu0 0
      %868 = vmatpush1.bf16.msra.mxu0 %v855
      %869 = vmatprep.subr.bf16.mxu0 0
      %870 = vmatpush1.bf16.msra.mxu0 %v854
      %871 = vmatprep.subr.bf16.mxu0 0
      %872 = vmatpush1.bf16.msra.mxu0 %v853
      %873 = vmatprep.subr.bf16.mxu0 0
      %874 = vmatpush1.bf16.msra.mxu0 %v852
      %875 = vmatprep.subr.bf16.mxu0 0
      %876 = vmatpush1.bf16.msra.mxu0 %v851
      %877 = vmatprep.subr.bf16.mxu0 0
      %878 = vmatpush1.bf16.msra.mxu0 %v850
      %879 = vmatprep.subr.bf16.mxu0 0
      %880 = vmatpush1.bf16.msra.mxu0 %v849
      %881 = vmatprep.subr.bf16.mxu0 0
      %882 = vmatpush2.bf16.msra.mxu0 0
      %883 = vmatprep.subr.bf16.mxu0 0
      %884 = vmatpush2.bf16.msra.mxu0 0
      %885 = vmatprep.subr.bf16.mxu0 0
      %886 = vmatpush2.bf16.msra.mxu0 0
      %887 = vmatprep.subr.bf16.mxu0 0
      %888 = vmatpush2.bf16.msra.mxu0 0
      %889 = vmatprep.subr.bf16.mxu0 0
      %890 = vmatpush2.bf16.msra.mxu0 0
      %891 = vmatprep.subr.bf16.mxu0 0
      %892 = vmatpush2.bf16.msra.mxu0 0
      %893 = vmatprep.subr.bf16.mxu0 0
      %894 = vmatpush2.bf16.msra.mxu0 0
      %895 = vmatprep.subr.bf16.mxu0 0
      %896 = vmatpush2.bf16.msra.mxu0 0
      %897 = vmatprep.mubr.bf16.mxu0 0
      %898 = vmatmul.mubr.bf16.gmra.mxu0 %v793
      %v899 = vpop.f32.mrf.mxu0
      %v900 = vadd.f32 %v815, %v899
      %v901 = vpop.f32.mrf.mxu0
      %v902 = vpop.f32.mrf.mxu0
      %v903 = vpop.f32.mrf.mxu0
      %904 = vdwg.mxu0
      %v905 = vadd.f32 %v448, %v900
      %v906 = vpack.c.bf16 %v905, %v905
      %s907 = scalar_lea.vmem %s2, 64
      %v908 = vld [vmem:[%s907] sm:$0xf]
      %v909 = vld [vmem:[%s907 + $0x4] sm:$0xf]
      %v910 = vld [vmem:[%s907 + $0x8] sm:$0xf]
      %v911 = vld [vmem:[%s907 + $0xc] sm:$0xf]
      %v912 = vld [vmem:[%s907 + $0x10] sm:$0xf]
      %v913 = vld [vmem:[%s907 + $0x14] sm:$0xf]
      %v914 = vld [vmem:[%s907 + $0x18] sm:$0xf]
      %v915 = vld [vmem:[%s907 + $0x1c] sm:$0xf]
      %v916 = vld [vmem:[%s907 + $0x20] sm:$0xf]
      %v917 = vld [vmem:[%s907 + $0x24] sm:$0xf]
      %v918 = vld [vmem:[%s907 + $0x28] sm:$0xf]
      %v919 = vld [vmem:[%s907 + $0x2c] sm:$0xf]
      %v920 = vld [vmem:[%s907 + $0x30] sm:$0xf]
      %v921 = vld [vmem:[%s907 + $0x34] sm:$0xf]
      %v922 = vld [vmem:[%s907 + $0x38] sm:$0xf]
      %v923 = vld [vmem:[%s907 + $0x3c] sm:$0xf]
      %s924 = scalar_lea.vmem %s3, 1
      %v925 = vld [vmem:[%s924] sm:$0x1]
      %v927 = vlaneseq
      %v928 = vshrl.u32 %v927, 7
      %v929 = vsub.s32 0, %v928
      %v930 = vrot.slane %v925, %v929
      %v948 = vunpack.c.l.b16 %v908
      %v949 = vunpack.c.l.b16 %v909
      %v950 = vunpack.c.l.b16 %v910
      %v951 = vunpack.c.l.b16 %v911
      %v952 = vunpack.c.l.b16 %v912
      %v953 = vunpack.c.l.b16 %v913
      %v954 = vunpack.c.l.b16 %v914
      %v955 = vunpack.c.l.b16 %v915
      %v956 = vunpack.c.l.b16 %v916
      %v957 = vunpack.c.l.b16 %v917
      %v958 = vunpack.c.l.b16 %v918
      %v959 = vunpack.c.l.b16 %v919
      %v960 = vunpack.c.l.b16 %v920
      %v961 = vunpack.c.l.b16 %v921
      %v962 = vunpack.c.l.b16 %v922
      %v963 = vunpack.c.l.b16 %v923
      %v964 = vpack.c.b16 %v949, %v948
      %v965 = vpack.c.b16 %v951, %v950
      %v966 = vpack.c.b16 %v953, %v952
      %v967 = vpack.c.b16 %v955, %v954
      %v968 = vpack.c.b16 %v957, %v956
      %v969 = vpack.c.b16 %v959, %v958
      %v970 = vpack.c.b16 %v961, %v960
      %v971 = vpack.c.b16 %v963, %v962
      %980 = vmatprep.subr.bf16.mxu0 0
      %981 = vmatpush1.bf16.msra.mxu0 %v971
      %982 = vmatprep.subr.bf16.mxu0 0
      %983 = vmatpush1.bf16.msra.mxu0 %v970
      %984 = vmatprep.subr.bf16.mxu0 0
      %985 = vmatpush1.bf16.msra.mxu0 %v969
      %986 = vmatprep.subr.bf16.mxu0 0
      %987 = vmatpush1.bf16.msra.mxu0 %v968
      %988 = vmatprep.subr.bf16.mxu0 0
      %989 = vmatpush1.bf16.msra.mxu0 %v967
      %990 = vmatprep.subr.bf16.mxu0 0
      %991 = vmatpush1.bf16.msra.mxu0 %v966
      %992 = vmatprep.subr.bf16.mxu0 0
      %993 = vmatpush1.bf16.msra.mxu0 %v965
      %994 = vmatprep.subr.bf16.mxu0 0
      %995 = vmatpush1.bf16.msra.mxu0 %v964
      %996 = vmatprep.subr.bf16.mxu0 0
      %997 = vmatpush2.bf16.msra.mxu0 0
      %998 = vmatprep.subr.bf16.mxu0 0
      %999 = vmatpush2.bf16.msra.mxu0 0
      %1000 = vmatprep.subr.bf16.mxu0 0
      %1001 = vmatpush2.bf16.msra.mxu0 0
      %1002 = vmatprep.subr.bf16.mxu0 0
      %1003 = vmatpush2.bf16.msra.mxu0 0
      %1004 = vmatprep.subr.bf16.mxu0 0
      %1005 = vmatpush2.bf16.msra.mxu0 0
      %1006 = vmatprep.subr.bf16.mxu0 0
      %1007 = vmatpush2.bf16.msra.mxu0 0
      %1008 = vmatprep.subr.bf16.mxu0 0
      %1009 = vmatpush2.bf16.msra.mxu0 0
      %1010 = vmatprep.subr.bf16.mxu0 0
      %1011 = vmatpush2.bf16.msra.mxu0 0
      %1012 = vmatprep.mubr.bf16.mxu0 0
      %1013 = vmatmul.mubr.bf16.gmra.mxu0 %v906
      %v1014 = vpop.f32.mrf.mxu0
      %v1015 = vadd.f32 %v930, %v1014
      %v1016 = vpop.f32.mrf.mxu0
      %v1017 = vpop.f32.mrf.mxu0
      %v1018 = vpop.f32.mrf.mxu0
      %1019 = vdwg.mxu0
      %v1020 = vmax.f32 %v1015, 0.0
      %v1021 = vpack.c.bf16 %v1020, %v1020
      %s1022 = scalar_lea.vmem %s4, 128
      %v1023 = vld [vmem:[%s1022] sm:$0xf]
      %v1024 = vld [vmem:[%s1022 + $0x4] sm:$0xf]
      %v1025 = vld [vmem:[%s1022 + $0x8] sm:$0xf]
      %v1026 = vld [vmem:[%s1022 + $0xc] sm:$0xf]
      %v1027 = vld [vmem:[%s1022 + $0x10] sm:$0xf]
      %v1028 = vld [vmem:[%s1022 + $0x14] sm:$0xf]
      %v1029 = vld [vmem:[%s1022 + $0x18] sm:$0xf]
      %v1030 = vld [vmem:[%s1022 + $0x1c] sm:$0xf]
      %v1031 = vld [vmem:[%s1022 + $0x20] sm:$0xf]
      %v1032 = vld [vmem:[%s1022 + $0x24] sm:$0xf]
      %v1033 = vld [vmem:[%s1022 + $0x28] sm:$0xf]
      %v1034 = vld [vmem:[%s1022 + $0x2c] sm:$0xf]
      %v1035 = vld [vmem:[%s1022 + $0x30] sm:$0xf]
      %v1036 = vld [vmem:[%s1022 + $0x34] sm:$0xf]
      %v1037 = vld [vmem:[%s1022 + $0x38] sm:$0xf]
      %v1038 = vld [vmem:[%s1022 + $0x3c] sm:$0xf]
      %s1039 = scalar_lea.vmem %s5, 2
      %v1040 = vld [vmem:[%s1039] sm:$0x1]
      %v1042 = vlaneseq
      %v1043 = vshrl.u32 %v1042, 7
      %v1044 = vsub.s32 0, %v1043
      %v1045 = vrot.slane %v1040, %v1044
      %v1063 = vunpack.c.l.b16 %v1023
      %v1064 = vunpack.c.l.b16 %v1024
      %v1065 = vunpack.c.l.b16 %v1025
      %v1066 = vunpack.c.l.b16 %v1026
      %v1067 = vunpack.c.l.b16 %v1027
      %v1068 = vunpack.c.l.b16 %v1028
      %v1069 = vunpack.c.l.b16 %v1029
      %v1070 = vunpack.c.l.b16 %v1030
      %v1071 = vunpack.c.l.b16 %v1031
      %v1072 = vunpack.c.l.b16 %v1032
      %v1073 = vunpack.c.l.b16 %v1033
      %v1074 = vunpack.c.l.b16 %v1034
      %v1075 = vunpack.c.l.b16 %v1035
      %v1076 = vunpack.c.l.b16 %v1036
      %v1077 = vunpack.c.l.b16 %v1037
      %v1078 = vunpack.c.l.b16 %v1038
      %v1079 = vpack.c.b16 %v1064, %v1063
      %v1080 = vpack.c.b16 %v1066, %v1065
      %v1081 = vpack.c.b16 %v1068, %v1067
      %v1082 = vpack.c.b16 %v1070, %v1069
      %v1083 = vpack.c.b16 %v1072, %v1071
      %v1084 = vpack.c.b16 %v1074, %v1073
      %v1085 = vpack.c.b16 %v1076, %v1075
      %v1086 = vpack.c.b16 %v1078, %v1077
      %1095 = vmatprep.subr.bf16.mxu0 0
      %1096 = vmatpush1.bf16.msra.mxu0 %v1086
      %1097 = vmatprep.subr.bf16.mxu0 0
      %1098 = vmatpush1.bf16.msra.mxu0 %v1085
      %1099 = vmatprep.subr.bf16.mxu0 0
      %1100 = vmatpush1.bf16.msra.mxu0 %v1084
      %1101 = vmatprep.subr.bf16.mxu0 0
      %1102 = vmatpush1.bf16.msra.mxu0 %v1083
      %1103 = vmatprep.subr.bf16.mxu0 0
      %1104 = vmatpush1.bf16.msra.mxu0 %v1082
      %1105 = vmatprep.subr.bf16.mxu0 0
      %1106 = vmatpush1.bf16.msra.mxu0 %v1081
      %1107 = vmatprep.subr.bf16.mxu0 0
      %1108 = vmatpush1.bf16.msra.mxu0 %v1080
      %1109 = vmatprep.subr.bf16.mxu0 0
      %1110 = vmatpush1.bf16.msra.mxu0 %v1079
      %1111 = vmatprep.subr.bf16.mxu0 0
      %1112 = vmatpush2.bf16.msra.mxu0 0
      %1113 = vmatprep.subr.bf16.mxu0 0
      %1114 = vmatpush2.bf16.msra.mxu0 0
      %1115 = vmatprep.subr.bf16.mxu0 0
      %1116 = vmatpush2.bf16.msra.mxu0 0
      %1117 = vmatprep.subr.bf16.mxu0 0
      %1118 = vmatpush2.bf16.msra.mxu0 0
      %1119 = vmatprep.subr.bf16.mxu0 0
      %1120 = vmatpush2.bf16.msra.mxu0 0
      %1121 = vmatprep.subr.bf16.mxu0 0
      %1122 = vmatpush2.bf16.msra.mxu0 0
      %1123 = vmatprep.subr.bf16.mxu0 0
      %1124 = vmatpush2.bf16.msra.mxu0 0
      %1125 = vmatprep.subr.bf16.mxu0 0
      %1126 = vmatpush2.bf16.msra.mxu0 0
      %1127 = vmatprep.mubr.bf16.mxu0 0
      %1128 = vmatmul.mubr.bf16.gmra.mxu0 %v1021
      %v1129 = vpop.f32.mrf.mxu0
      %v1130 = vadd.f32 %v1045, %v1129
      %v1131 = vpop.f32.mrf.mxu0
      %v1132 = vpop.f32.mrf.mxu0
      %v1133 = vpop.f32.mrf.mxu0
      %1134 = vdwg.mxu0
      %v1135 = vmax.f32 %v1130, 0.0
      %v1136 = vpack.c.bf16 %v1135, %v1135
      %s1137 = scalar_lea.vmem %s4, 192
      %v1138 = vld [vmem:[%s1137] sm:$0xf]
      %v1139 = vld [vmem:[%s1137 + $0x4] sm:$0xf]
      %v1140 = vld [vmem:[%s1137 + $0x8] sm:$0xf]
      %v1141 = vld [vmem:[%s1137 + $0xc] sm:$0xf]
      %v1142 = vld [vmem:[%s1137 + $0x10] sm:$0xf]
      %v1143 = vld [vmem:[%s1137 + $0x14] sm:$0xf]
      %v1144 = vld [vmem:[%s1137 + $0x18] sm:$0xf]
      %v1145 = vld [vmem:[%s1137 + $0x1c] sm:$0xf]
      %v1146 = vld [vmem:[%s1137 + $0x20] sm:$0xf]
      %v1147 = vld [vmem:[%s1137 + $0x24] sm:$0xf]
      %v1148 = vld [vmem:[%s1137 + $0x28] sm:$0xf]
      %v1149 = vld [vmem:[%s1137 + $0x2c] sm:$0xf]
      %v1150 = vld [vmem:[%s1137 + $0x30] sm:$0xf]
      %v1151 = vld [vmem:[%s1137 + $0x34] sm:$0xf]
      %v1152 = vld [vmem:[%s1137 + $0x38] sm:$0xf]
      %v1153 = vld [vmem:[%s1137 + $0x3c] sm:$0xf]
      %s1154 = scalar_lea.vmem %s5, 3
      %v1155 = vld [vmem:[%s1154] sm:$0x1]
      %v1157 = vlaneseq
      %v1158 = vshrl.u32 %v1157, 7
      %v1159 = vsub.s32 0, %v1158
      %v1160 = vrot.slane %v1155, %v1159
      %v1178 = vunpack.c.l.b16 %v1138
      %v1179 = vunpack.c.l.b16 %v1139
      %v1180 = vunpack.c.l.b16 %v1140
      %v1181 = vunpack.c.l.b16 %v1141
      %v1182 = vunpack.c.l.b16 %v1142
      %v1183 = vunpack.c.l.b16 %v1143
      %v1184 = vunpack.c.l.b16 %v1144
      %v1185 = vunpack.c.l.b16 %v1145
      %v1186 = vunpack.c.l.b16 %v1146
      %v1187 = vunpack.c.l.b16 %v1147
      %v1188 = vunpack.c.l.b16 %v1148
      %v1189 = vunpack.c.l.b16 %v1149
      %v1190 = vunpack.c.l.b16 %v1150
      %v1191 = vunpack.c.l.b16 %v1151
      %v1192 = vunpack.c.l.b16 %v1152
      %v1193 = vunpack.c.l.b16 %v1153
      %v1194 = vpack.c.b16 %v1179, %v1178
      %v1195 = vpack.c.b16 %v1181, %v1180
      %v1196 = vpack.c.b16 %v1183, %v1182
      %v1197 = vpack.c.b16 %v1185, %v1184
      %v1198 = vpack.c.b16 %v1187, %v1186
      %v1199 = vpack.c.b16 %v1189, %v1188
      %v1200 = vpack.c.b16 %v1191, %v1190
      %v1201 = vpack.c.b16 %v1193, %v1192
      %1210 = vmatprep.subr.bf16.mxu0 0
      %1211 = vmatpush1.bf16.msra.mxu0 %v1201
      %1212 = vmatprep.subr.bf16.mxu0 0
      %1213 = vmatpush1.bf16.msra.mxu0 %v1200
      %1214 = vmatprep.subr.bf16.mxu0 0
      %1215 = vmatpush1.bf16.msra.mxu0 %v1199
      %1216 = vmatprep.subr.bf16.mxu0 0
      %1217 = vmatpush1.bf16.msra.mxu0 %v1198
      %1218 = vmatprep.subr.bf16.mxu0 0
      %1219 = vmatpush1.bf16.msra.mxu0 %v1197
      %1220 = vmatprep.subr.bf16.mxu0 0
      %1221 = vmatpush1.bf16.msra.mxu0 %v1196
      %1222 = vmatprep.subr.bf16.mxu0 0
      %1223 = vmatpush1.bf16.msra.mxu0 %v1195
      %1224 = vmatprep.subr.bf16.mxu0 0
      %1225 = vmatpush1.bf16.msra.mxu0 %v1194
      %1226 = vmatprep.subr.bf16.mxu0 0
      %1227 = vmatpush2.bf16.msra.mxu0 0
      %1228 = vmatprep.subr.bf16.mxu0 0
      %1229 = vmatpush2.bf16.msra.mxu0 0
      %1230 = vmatprep.subr.bf16.mxu0 0
      %1231 = vmatpush2.bf16.msra.mxu0 0
      %1232 = vmatprep.subr.bf16.mxu0 0
      %1233 = vmatpush2.bf16.msra.mxu0 0
      %1234 = vmatprep.subr.bf16.mxu0 0
      %1235 = vmatpush2.bf16.msra.mxu0 0
      %1236 = vmatprep.subr.bf16.mxu0 0
      %1237 = vmatpush2.bf16.msra.mxu0 0
      %1238 = vmatprep.subr.bf16.mxu0 0
      %1239 = vmatpush2.bf16.msra.mxu0 0
      %1240 = vmatprep.subr.bf16.mxu0 0
      %1241 = vmatpush2.bf16.msra.mxu0 0
      %1242 = vmatprep.mubr.bf16.mxu0 0
      %1243 = vmatmul.mubr.bf16.gmra.mxu0 %v1136
      %v1244 = vpop.f32.mrf.mxu0
      %v1245 = vadd.f32 %v1160, %v1244
      %v1246 = vpop.f32.mrf.mxu0
      %v1247 = vpop.f32.mrf.mxu0
      %v1248 = vpop.f32.mrf.mxu0
      %1249 = vdwg.mxu0
      %v1250 = vmax.f32 %v1245, 0.0
      %v1251 = vpack.c.bf16 %v1250, %v1250
      %s1252 = scalar_lea.vmem %s6, 64
      %v1253 = vld [vmem:[%s1252] sm:$0xf]
      %v1254 = vld [vmem:[%s1252 + $0x4] sm:$0xf]
      %v1255 = vld [vmem:[%s1252 + $0x8] sm:$0xf]
      %v1256 = vld [vmem:[%s1252 + $0xc] sm:$0xf]
      %v1257 = vld [vmem:[%s1252 + $0x10] sm:$0xf]
      %v1258 = vld [vmem:[%s1252 + $0x14] sm:$0xf]
      %v1259 = vld [vmem:[%s1252 + $0x18] sm:$0xf]
      %v1260 = vld [vmem:[%s1252 + $0x1c] sm:$0xf]
      %v1261 = vld [vmem:[%s1252 + $0x20] sm:$0xf]
      %v1262 = vld [vmem:[%s1252 + $0x24] sm:$0xf]
      %v1263 = vld [vmem:[%s1252 + $0x28] sm:$0xf]
      %v1264 = vld [vmem:[%s1252 + $0x2c] sm:$0xf]
      %v1265 = vld [vmem:[%s1252 + $0x30] sm:$0xf]
      %v1266 = vld [vmem:[%s1252 + $0x34] sm:$0xf]
      %v1267 = vld [vmem:[%s1252 + $0x38] sm:$0xf]
      %v1268 = vld [vmem:[%s1252 + $0x3c] sm:$0xf]
      %s1269 = scalar_lea.vmem %s7, 1
      %v1270 = vld [vmem:[%s1269] sm:$0x1]
      %v1272 = vlaneseq
      %v1273 = vshrl.u32 %v1272, 7
      %v1274 = vsub.s32 0, %v1273
      %v1275 = vrot.slane %v1270, %v1274
      %v1293 = vunpack.c.l.b16 %v1253
      %v1294 = vunpack.c.l.b16 %v1254
      %v1295 = vunpack.c.l.b16 %v1255
      %v1296 = vunpack.c.l.b16 %v1256
      %v1297 = vunpack.c.l.b16 %v1257
      %v1298 = vunpack.c.l.b16 %v1258
      %v1299 = vunpack.c.l.b16 %v1259
      %v1300 = vunpack.c.l.b16 %v1260
      %v1301 = vunpack.c.l.b16 %v1261
      %v1302 = vunpack.c.l.b16 %v1262
      %v1303 = vunpack.c.l.b16 %v1263
      %v1304 = vunpack.c.l.b16 %v1264
      %v1305 = vunpack.c.l.b16 %v1265
      %v1306 = vunpack.c.l.b16 %v1266
      %v1307 = vunpack.c.l.b16 %v1267
      %v1308 = vunpack.c.l.b16 %v1268
      %v1309 = vpack.c.b16 %v1294, %v1293
      %v1310 = vpack.c.b16 %v1296, %v1295
      %v1311 = vpack.c.b16 %v1298, %v1297
      %v1312 = vpack.c.b16 %v1300, %v1299
      %v1313 = vpack.c.b16 %v1302, %v1301
      %v1314 = vpack.c.b16 %v1304, %v1303
      %v1315 = vpack.c.b16 %v1306, %v1305
      %v1316 = vpack.c.b16 %v1308, %v1307
      %1325 = vmatprep.subr.bf16.mxu0 0
      %1326 = vmatpush1.bf16.msra.mxu0 %v1316
      %1327 = vmatprep.subr.bf16.mxu0 0
      %1328 = vmatpush1.bf16.msra.mxu0 %v1315
      %1329 = vmatprep.subr.bf16.mxu0 0
      %1330 = vmatpush1.bf16.msra.mxu0 %v1314
      %1331 = vmatprep.subr.bf16.mxu0 0
      %1332 = vmatpush1.bf16.msra.mxu0 %v1313
      %1333 = vmatprep.subr.bf16.mxu0 0
      %1334 = vmatpush1.bf16.msra.mxu0 %v1312
      %1335 = vmatprep.subr.bf16.mxu0 0
      %1336 = vmatpush1.bf16.msra.mxu0 %v1311
      %1337 = vmatprep.subr.bf16.mxu0 0
      %1338 = vmatpush1.bf16.msra.mxu0 %v1310
      %1339 = vmatprep.subr.bf16.mxu0 0
      %1340 = vmatpush1.bf16.msra.mxu0 %v1309
      %1341 = vmatprep.subr.bf16.mxu0 0
      %1342 = vmatpush2.bf16.msra.mxu0 0
      %1343 = vmatprep.subr.bf16.mxu0 0
      %1344 = vmatpush2.bf16.msra.mxu0 0
      %1345 = vmatprep.subr.bf16.mxu0 0
      %1346 = vmatpush2.bf16.msra.mxu0 0
      %1347 = vmatprep.subr.bf16.mxu0 0
      %1348 = vmatpush2.bf16.msra.mxu0 0
      %1349 = vmatprep.subr.bf16.mxu0 0
      %1350 = vmatpush2.bf16.msra.mxu0 0
      %1351 = vmatprep.subr.bf16.mxu0 0
      %1352 = vmatpush2.bf16.msra.mxu0 0
      %1353 = vmatprep.subr.bf16.mxu0 0
      %1354 = vmatpush2.bf16.msra.mxu0 0
      %1355 = vmatprep.subr.bf16.mxu0 0
      %1356 = vmatpush2.bf16.msra.mxu0 0
      %1357 = vmatprep.mubr.bf16.mxu0 0
      %1358 = vmatmul.mubr.bf16.gmra.mxu0 %v1251
      %v1359 = vpop.f32.mrf.mxu0
      %v1360 = vadd.f32 %v1275, %v1359
      %v1361 = vpop.f32.mrf.mxu0
      %v1362 = vpop.f32.mrf.mxu0
      %v1363 = vpop.f32.mrf.mxu0
      %1364 = vdwg.mxu0
      %v1365 = vadd.f32 %v449, %v1360
      %v1366 = vpack.c.bf16 %v1365, %v1365
      %s1367 = scalar_lea.vmem %s2, 128
      %v1368 = vld [vmem:[%s1367] sm:$0xf]
      %v1369 = vld [vmem:[%s1367 + $0x4] sm:$0xf]
      %v1370 = vld [vmem:[%s1367 + $0x8] sm:$0xf]
      %v1371 = vld [vmem:[%s1367 + $0xc] sm:$0xf]
      %v1372 = vld [vmem:[%s1367 + $0x10] sm:$0xf]
      %v1373 = vld [vmem:[%s1367 + $0x14] sm:$0xf]
      %v1374 = vld [vmem:[%s1367 + $0x18] sm:$0xf]
      %v1375 = vld [vmem:[%s1367 + $0x1c] sm:$0xf]
      %v1376 = vld [vmem:[%s1367 + $0x20] sm:$0xf]
      %v1377 = vld [vmem:[%s1367 + $0x24] sm:$0xf]
      %v1378 = vld [vmem:[%s1367 + $0x28] sm:$0xf]
      %v1379 = vld [vmem:[%s1367 + $0x2c] sm:$0xf]
      %v1380 = vld [vmem:[%s1367 + $0x30] sm:$0xf]
      %v1381 = vld [vmem:[%s1367 + $0x34] sm:$0xf]
      %v1382 = vld [vmem:[%s1367 + $0x38] sm:$0xf]
      %v1383 = vld [vmem:[%s1367 + $0x3c] sm:$0xf]
      %s1384 = scalar_lea.vmem %s3, 2
      %v1385 = vld [vmem:[%s1384] sm:$0x1]
      %v1387 = vlaneseq
      %v1388 = vshrl.u32 %v1387, 7
      %v1389 = vsub.s32 0, %v1388
      %v1390 = vrot.slane %v1385, %v1389
      %v1408 = vunpack.c.l.b16 %v1368
      %v1409 = vunpack.c.l.b16 %v1369
      %v1410 = vunpack.c.l.b16 %v1370
      %v1411 = vunpack.c.l.b16 %v1371
      %v1412 = vunpack.c.l.b16 %v1372
      %v1413 = vunpack.c.l.b16 %v1373
      %v1414 = vunpack.c.l.b16 %v1374
      %v1415 = vunpack.c.l.b16 %v1375
      %v1416 = vunpack.c.l.b16 %v1376
      %v1417 = vunpack.c.l.b16 %v1377
      %v1418 = vunpack.c.l.b16 %v1378
      %v1419 = vunpack.c.l.b16 %v1379
      %v1420 = vunpack.c.l.b16 %v1380
      %v1421 = vunpack.c.l.b16 %v1381
      %v1422 = vunpack.c.l.b16 %v1382
      %v1423 = vunpack.c.l.b16 %v1383
      %v1424 = vpack.c.b16 %v1409, %v1408
      %v1425 = vpack.c.b16 %v1411, %v1410
      %v1426 = vpack.c.b16 %v1413, %v1412
      %v1427 = vpack.c.b16 %v1415, %v1414
      %v1428 = vpack.c.b16 %v1417, %v1416
      %v1429 = vpack.c.b16 %v1419, %v1418
      %v1430 = vpack.c.b16 %v1421, %v1420
      %v1431 = vpack.c.b16 %v1423, %v1422
      %1440 = vmatprep.subr.bf16.mxu0 0
      %1441 = vmatpush1.bf16.msra.mxu0 %v1431
      %1442 = vmatprep.subr.bf16.mxu0 0
      %1443 = vmatpush1.bf16.msra.mxu0 %v1430
      %1444 = vmatprep.subr.bf16.mxu0 0
      %1445 = vmatpush1.bf16.msra.mxu0 %v1429
      %1446 = vmatprep.subr.bf16.mxu0 0
      %1447 = vmatpush1.bf16.msra.mxu0 %v1428
      %1448 = vmatprep.subr.bf16.mxu0 0
      %1449 = vmatpush1.bf16.msra.mxu0 %v1427
      %1450 = vmatprep.subr.bf16.mxu0 0
      %1451 = vmatpush1.bf16.msra.mxu0 %v1426
      %1452 = vmatprep.subr.bf16.mxu0 0
      %1453 = vmatpush1.bf16.msra.mxu0 %v1425
      %1454 = vmatprep.subr.bf16.mxu0 0
      %1455 = vmatpush1.bf16.msra.mxu0 %v1424
      %1456 = vmatprep.subr.bf16.mxu0 0
      %1457 = vmatpush2.bf16.msra.mxu0 0
      %1458 = vmatprep.subr.bf16.mxu0 0
      %1459 = vmatpush2.bf16.msra.mxu0 0
      %1460 = vmatprep.subr.bf16.mxu0 0
      %1461 = vmatpush2.bf16.msra.mxu0 0
      %1462 = vmatprep.subr.bf16.mxu0 0
      %1463 = vmatpush2.bf16.msra.mxu0 0
      %1464 = vmatprep.subr.bf16.mxu0 0
      %1465 = vmatpush2.bf16.msra.mxu0 0
      %1466 = vmatprep.subr.bf16.mxu0 0
      %1467 = vmatpush2.bf16.msra.mxu0 0
      %1468 = vmatprep.subr.bf16.mxu0 0
      %1469 = vmatpush2.bf16.msra.mxu0 0
      %1470 = vmatprep.subr.bf16.mxu0 0
      %1471 = vmatpush2.bf16.msra.mxu0 0
      %1472 = vmatprep.mubr.bf16.mxu0 0
      %1473 = vmatmul.mubr.bf16.gmra.mxu0 %v1366
      %v1474 = vpop.f32.mrf.mxu0
      %v1475 = vadd.f32 %v1390, %v1474
      %v1476 = vpop.f32.mrf.mxu0
      %v1477 = vpop.f32.mrf.mxu0
      %v1478 = vpop.f32.mrf.mxu0
      %1479 = vdwg.mxu0
      %v1480 = vmax.f32 %v1475, 0.0
      %v1481 = vpack.c.bf16 %v1480, %v1480
      %s1482 = scalar_lea.vmem %s4, 256
      %v1483 = vld [vmem:[%s1482] sm:$0xf]
      %v1484 = vld [vmem:[%s1482 + $0x4] sm:$0xf]
      %v1485 = vld [vmem:[%s1482 + $0x8] sm:$0xf]
      %v1486 = vld [vmem:[%s1482 + $0xc] sm:$0xf]
      %v1487 = vld [vmem:[%s1482 + $0x10] sm:$0xf]
      %v1488 = vld [vmem:[%s1482 + $0x14] sm:$0xf]
      %v1489 = vld [vmem:[%s1482 + $0x18] sm:$0xf]
      %v1490 = vld [vmem:[%s1482 + $0x1c] sm:$0xf]
      %v1491 = vld [vmem:[%s1482 + $0x20] sm:$0xf]
      %v1492 = vld [vmem:[%s1482 + $0x24] sm:$0xf]
      %v1493 = vld [vmem:[%s1482 + $0x28] sm:$0xf]
      %v1494 = vld [vmem:[%s1482 + $0x2c] sm:$0xf]
      %v1495 = vld [vmem:[%s1482 + $0x30] sm:$0xf]
      %v1496 = vld [vmem:[%s1482 + $0x34] sm:$0xf]
      %v1497 = vld [vmem:[%s1482 + $0x38] sm:$0xf]
      %v1498 = vld [vmem:[%s1482 + $0x3c] sm:$0xf]
      %s1499 = scalar_lea.vmem %s5, 4
      %v1500 = vld [vmem:[%s1499] sm:$0x1]
      %v1502 = vlaneseq
      %v1503 = vshrl.u32 %v1502, 7
      %v1504 = vsub.s32 0, %v1503
      %v1505 = vrot.slane %v1500, %v1504
      %v1523 = vunpack.c.l.b16 %v1483
      %v1524 = vunpack.c.l.b16 %v1484
      %v1525 = vunpack.c.l.b16 %v1485
      %v1526 = vunpack.c.l.b16 %v1486
      %v1527 = vunpack.c.l.b16 %v1487
      %v1528 = vunpack.c.l.b16 %v1488
      %v1529 = vunpack.c.l.b16 %v1489
      %v1530 = vunpack.c.l.b16 %v1490
      %v1531 = vunpack.c.l.b16 %v1491
      %v1532 = vunpack.c.l.b16 %v1492
      %v1533 = vunpack.c.l.b16 %v1493
      %v1534 = vunpack.c.l.b16 %v1494
      %v1535 = vunpack.c.l.b16 %v1495
      %v1536 = vunpack.c.l.b16 %v1496
      %v1537 = vunpack.c.l.b16 %v1497
      %v1538 = vunpack.c.l.b16 %v1498
      %v1539 = vpack.c.b16 %v1524, %v1523
      %v1540 = vpack.c.b16 %v1526, %v1525
      %v1541 = vpack.c.b16 %v1528, %v1527
      %v1542 = vpack.c.b16 %v1530, %v1529
      %v1543 = vpack.c.b16 %v1532, %v1531
      %v1544 = vpack.c.b16 %v1534, %v1533
      %v1545 = vpack.c.b16 %v1536, %v1535
      %v1546 = vpack.c.b16 %v1538, %v1537
      %1555 = vmatprep.subr.bf16.mxu0 0
      %1556 = vmatpush1.bf16.msra.mxu0 %v1546
      %1557 = vmatprep.subr.bf16.mxu0 0
      %1558 = vmatpush1.bf16.msra.mxu0 %v1545
      %1559 = vmatprep.subr.bf16.mxu0 0
      %1560 = vmatpush1.bf16.msra.mxu0 %v1544
      %1561 = vmatprep.subr.bf16.mxu0 0
      %1562 = vmatpush1.bf16.msra.mxu0 %v1543
      %1563 = vmatprep.subr.bf16.mxu0 0
      %1564 = vmatpush1.bf16.msra.mxu0 %v1542
      %1565 = vmatprep.subr.bf16.mxu0 0
      %1566 = vmatpush1.bf16.msra.mxu0 %v1541
      %1567 = vmatprep.subr.bf16.mxu0 0
      %1568 = vmatpush1.bf16.msra.mxu0 %v1540
      %1569 = vmatprep.subr.bf16.mxu0 0
      %1570 = vmatpush1.bf16.msra.mxu0 %v1539
      %1571 = vmatprep.subr.bf16.mxu0 0
      %1572 = vmatpush2.bf16.msra.mxu0 0
      %1573 = vmatprep.subr.bf16.mxu0 0
      %1574 = vmatpush2.bf16.msra.mxu0 0
      %1575 = vmatprep.subr.bf16.mxu0 0
      %1576 = vmatpush2.bf16.msra.mxu0 0
      %1577 = vmatprep.subr.bf16.mxu0 0
      %1578 = vmatpush2.bf16.msra.mxu0 0
      %1579 = vmatprep.subr.bf16.mxu0 0
      %1580 = vmatpush2.bf16.msra.mxu0 0
      %1581 = vmatprep.subr.bf16.mxu0 0
      %1582 = vmatpush2.bf16.msra.mxu0 0
      %1583 = vmatprep.subr.bf16.mxu0 0
      %1584 = vmatpush2.bf16.msra.mxu0 0
      %1585 = vmatprep.subr.bf16.mxu0 0
      %1586 = vmatpush2.bf16.msra.mxu0 0
      %1587 = vmatprep.mubr.bf16.mxu0 0
      %1588 = vmatmul.mubr.bf16.gmra.mxu0 %v1481
      %v1589 = vpop.f32.mrf.mxu0
      %v1590 = vadd.f32 %v1505, %v1589
      %v1591 = vpop.f32.mrf.mxu0
      %v1592 = vpop.f32.mrf.mxu0
      %v1593 = vpop.f32.mrf.mxu0
      %1594 = vdwg.mxu0
      %v1595 = vmax.f32 %v1590, 0.0
      %v1596 = vpack.c.bf16 %v1595, %v1595
      %s1597 = scalar_lea.vmem %s4, 320
      %v1598 = vld [vmem:[%s1597] sm:$0xf]
      %v1599 = vld [vmem:[%s1597 + $0x4] sm:$0xf]
      %v1600 = vld [vmem:[%s1597 + $0x8] sm:$0xf]
      %v1601 = vld [vmem:[%s1597 + $0xc] sm:$0xf]
      %v1602 = vld [vmem:[%s1597 + $0x10] sm:$0xf]
      %v1603 = vld [vmem:[%s1597 + $0x14] sm:$0xf]
      %v1604 = vld [vmem:[%s1597 + $0x18] sm:$0xf]
      %v1605 = vld [vmem:[%s1597 + $0x1c] sm:$0xf]
      %v1606 = vld [vmem:[%s1597 + $0x20] sm:$0xf]
      %v1607 = vld [vmem:[%s1597 + $0x24] sm:$0xf]
      %v1608 = vld [vmem:[%s1597 + $0x28] sm:$0xf]
      %v1609 = vld [vmem:[%s1597 + $0x2c] sm:$0xf]
      %v1610 = vld [vmem:[%s1597 + $0x30] sm:$0xf]
      %v1611 = vld [vmem:[%s1597 + $0x34] sm:$0xf]
      %v1612 = vld [vmem:[%s1597 + $0x38] sm:$0xf]
      %v1613 = vld [vmem:[%s1597 + $0x3c] sm:$0xf]
      %s1614 = scalar_lea.vmem %s5, 5
      %v1615 = vld [vmem:[%s1614] sm:$0x1]
      %v1617 = vlaneseq
      %v1618 = vshrl.u32 %v1617, 7
      %v1619 = vsub.s32 0, %v1618
      %v1620 = vrot.slane %v1615, %v1619
      %v1638 = vunpack.c.l.b16 %v1598
      %v1639 = vunpack.c.l.b16 %v1599
      %v1640 = vunpack.c.l.b16 %v1600
      %v1641 = vunpack.c.l.b16 %v1601
      %v1642 = vunpack.c.l.b16 %v1602
      %v1643 = vunpack.c.l.b16 %v1603
      %v1644 = vunpack.c.l.b16 %v1604
      %v1645 = vunpack.c.l.b16 %v1605
      %v1646 = vunpack.c.l.b16 %v1606
      %v1647 = vunpack.c.l.b16 %v1607
      %v1648 = vunpack.c.l.b16 %v1608
      %v1649 = vunpack.c.l.b16 %v1609
      %v1650 = vunpack.c.l.b16 %v1610
      %v1651 = vunpack.c.l.b16 %v1611
      %v1652 = vunpack.c.l.b16 %v1612
      %v1653 = vunpack.c.l.b16 %v1613
      %v1654 = vpack.c.b16 %v1639, %v1638
      %v1655 = vpack.c.b16 %v1641, %v1640
      %v1656 = vpack.c.b16 %v1643, %v1642
      %v1657 = vpack.c.b16 %v1645, %v1644
      %v1658 = vpack.c.b16 %v1647, %v1646
      %v1659 = vpack.c.b16 %v1649, %v1648
      %v1660 = vpack.c.b16 %v1651, %v1650
      %v1661 = vpack.c.b16 %v1653, %v1652
      %1670 = vmatprep.subr.bf16.mxu0 0
      %1671 = vmatpush1.bf16.msra.mxu0 %v1661
      %1672 = vmatprep.subr.bf16.mxu0 0
      %1673 = vmatpush1.bf16.msra.mxu0 %v1660
      %1674 = vmatprep.subr.bf16.mxu0 0
      %1675 = vmatpush1.bf16.msra.mxu0 %v1659
      %1676 = vmatprep.subr.bf16.mxu0 0
      %1677 = vmatpush1.bf16.msra.mxu0 %v1658
      %1678 = vmatprep.subr.bf16.mxu0 0
      %1679 = vmatpush1.bf16.msra.mxu0 %v1657
      %1680 = vmatprep.subr.bf16.mxu0 0
      %1681 = vmatpush1.bf16.msra.mxu0 %v1656
      %1682 = vmatprep.subr.bf16.mxu0 0
      %1683 = vmatpush1.bf16.msra.mxu0 %v1655
      %1684 = vmatprep.subr.bf16.mxu0 0
      %1685 = vmatpush1.bf16.msra.mxu0 %v1654
      %1686 = vmatprep.subr.bf16.mxu0 0
      %1687 = vmatpush2.bf16.msra.mxu0 0
      %1688 = vmatprep.subr.bf16.mxu0 0
      %1689 = vmatpush2.bf16.msra.mxu0 0
      %1690 = vmatprep.subr.bf16.mxu0 0
      %1691 = vmatpush2.bf16.msra.mxu0 0
      %1692 = vmatprep.subr.bf16.mxu0 0
      %1693 = vmatpush2.bf16.msra.mxu0 0
      %1694 = vmatprep.subr.bf16.mxu0 0
      %1695 = vmatpush2.bf16.msra.mxu0 0
      %1696 = vmatprep.subr.bf16.mxu0 0
      %1697 = vmatpush2.bf16.msra.mxu0 0
      %1698 = vmatprep.subr.bf16.mxu0 0
      %1699 = vmatpush2.bf16.msra.mxu0 0
      %1700 = vmatprep.subr.bf16.mxu0 0
      %1701 = vmatpush2.bf16.msra.mxu0 0
      %1702 = vmatprep.mubr.bf16.mxu0 0
      %1703 = vmatmul.mubr.bf16.gmra.mxu0 %v1596
      %v1704 = vpop.f32.mrf.mxu0
      %v1705 = vadd.f32 %v1620, %v1704
      %v1706 = vpop.f32.mrf.mxu0
      %v1707 = vpop.f32.mrf.mxu0
      %v1708 = vpop.f32.mrf.mxu0
      %1709 = vdwg.mxu0
      %v1710 = vmax.f32 %v1705, 0.0
      %v1711 = vpack.c.bf16 %v1710, %v1710
      %s1712 = scalar_lea.vmem %s6, 128
      %v1713 = vld [vmem:[%s1712] sm:$0xf]
      %v1714 = vld [vmem:[%s1712 + $0x4] sm:$0xf]
      %v1715 = vld [vmem:[%s1712 + $0x8] sm:$0xf]
      %v1716 = vld [vmem:[%s1712 + $0xc] sm:$0xf]
      %v1717 = vld [vmem:[%s1712 + $0x10] sm:$0xf]
      %v1718 = vld [vmem:[%s1712 + $0x14] sm:$0xf]
      %v1719 = vld [vmem:[%s1712 + $0x18] sm:$0xf]
      %v1720 = vld [vmem:[%s1712 + $0x1c] sm:$0xf]
      %v1721 = vld [vmem:[%s1712 + $0x20] sm:$0xf]
      %v1722 = vld [vmem:[%s1712 + $0x24] sm:$0xf]
      %v1723 = vld [vmem:[%s1712 + $0x28] sm:$0xf]
      %v1724 = vld [vmem:[%s1712 + $0x2c] sm:$0xf]
      %v1725 = vld [vmem:[%s1712 + $0x30] sm:$0xf]
      %v1726 = vld [vmem:[%s1712 + $0x34] sm:$0xf]
      %v1727 = vld [vmem:[%s1712 + $0x38] sm:$0xf]
      %v1728 = vld [vmem:[%s1712 + $0x3c] sm:$0xf]
      %s1729 = scalar_lea.vmem %s7, 2
      %v1730 = vld [vmem:[%s1729] sm:$0x1]
      %v1732 = vlaneseq
      %v1733 = vshrl.u32 %v1732, 7
      %v1734 = vsub.s32 0, %v1733
      %v1735 = vrot.slane %v1730, %v1734
      %v1753 = vunpack.c.l.b16 %v1713
      %v1754 = vunpack.c.l.b16 %v1714
      %v1755 = vunpack.c.l.b16 %v1715
      %v1756 = vunpack.c.l.b16 %v1716
      %v1757 = vunpack.c.l.b16 %v1717
      %v1758 = vunpack.c.l.b16 %v1718
      %v1759 = vunpack.c.l.b16 %v1719
      %v1760 = vunpack.c.l.b16 %v1720
      %v1761 = vunpack.c.l.b16 %v1721
      %v1762 = vunpack.c.l.b16 %v1722
      %v1763 = vunpack.c.l.b16 %v1723
      %v1764 = vunpack.c.l.b16 %v1724
      %v1765 = vunpack.c.l.b16 %v1725
      %v1766 = vunpack.c.l.b16 %v1726
      %v1767 = vunpack.c.l.b16 %v1727
      %v1768 = vunpack.c.l.b16 %v1728
      %v1769 = vpack.c.b16 %v1754, %v1753
      %v1770 = vpack.c.b16 %v1756, %v1755
      %v1771 = vpack.c.b16 %v1758, %v1757
      %v1772 = vpack.c.b16 %v1760, %v1759
      %v1773 = vpack.c.b16 %v1762, %v1761
      %v1774 = vpack.c.b16 %v1764, %v1763
      %v1775 = vpack.c.b16 %v1766, %v1765
      %v1776 = vpack.c.b16 %v1768, %v1767
      %1785 = vmatprep.subr.bf16.mxu0 0
      %1786 = vmatpush1.bf16.msra.mxu0 %v1776
      %1787 = vmatprep.subr.bf16.mxu0 0
      %1788 = vmatpush1.bf16.msra.mxu0 %v1775
      %1789 = vmatprep.subr.bf16.mxu0 0
      %1790 = vmatpush1.bf16.msra.mxu0 %v1774
      %1791 = vmatprep.subr.bf16.mxu0 0
      %1792 = vmatpush1.bf16.msra.mxu0 %v1773
      %1793 = vmatprep.subr.bf16.mxu0 0
      %1794 = vmatpush1.bf16.msra.mxu0 %v1772
      %1795 = vmatprep.subr.bf16.mxu0 0
      %1796 = vmatpush1.bf16.msra.mxu0 %v1771
      %1797 = vmatprep.subr.bf16.mxu0 0
      %1798 = vmatpush1.bf16.msra.mxu0 %v1770
      %1799 = vmatprep.subr.bf16.mxu0 0
      %1800 = vmatpush1.bf16.msra.mxu0 %v1769
      %1801 = vmatprep.subr.bf16.mxu0 0
      %1802 = vmatpush2.bf16.msra.mxu0 0
      %1803 = vmatprep.subr.bf16.mxu0 0
      %1804 = vmatpush2.bf16.msra.mxu0 0
      %1805 = vmatprep.subr.bf16.mxu0 0
      %1806 = vmatpush2.bf16.msra.mxu0 0
      %1807 = vmatprep.subr.bf16.mxu0 0
      %1808 = vmatpush2.bf16.msra.mxu0 0
      %1809 = vmatprep.subr.bf16.mxu0 0
      %1810 = vmatpush2.bf16.msra.mxu0 0
      %1811 = vmatprep.subr.bf16.mxu0 0
      %1812 = vmatpush2.bf16.msra.mxu0 0
      %1813 = vmatprep.subr.bf16.mxu0 0
      %1814 = vmatpush2.bf16.msra.mxu0 0
      %1815 = vmatprep.subr.bf16.mxu0 0
      %1816 = vmatpush2.bf16.msra.mxu0 0
      %1817 = vmatprep.mubr.bf16.mxu0 0
      %1818 = vmatmul.mubr.bf16.gmra.mxu0 %v1711
      %v1819 = vpop.f32.mrf.mxu0
      %v1820 = vadd.f32 %v1735, %v1819
      %v1821 = vpop.f32.mrf.mxu0
      %v1822 = vpop.f32.mrf.mxu0
      %v1823 = vpop.f32.mrf.mxu0
      %1824 = vdwg.mxu0
      %v1825 = vadd.f32 %v905, %v1820
      %v1826 = vpack.c.bf16 %v1825, %v1825
      %s1827 = scalar_lea.vmem %s2, 192
      %v1828 = vld [vmem:[%s1827] sm:$0xf]
      %v1829 = vld [vmem:[%s1827 + $0x4] sm:$0xf]
      %v1830 = vld [vmem:[%s1827 + $0x8] sm:$0xf]
      %v1831 = vld [vmem:[%s1827 + $0xc] sm:$0xf]
      %v1832 = vld [vmem:[%s1827 + $0x10] sm:$0xf]
      %v1833 = vld [vmem:[%s1827 + $0x14] sm:$0xf]
      %v1834 = vld [vmem:[%s1827 + $0x18] sm:$0xf]
      %v1835 = vld [vmem:[%s1827 + $0x1c] sm:$0xf]
      %v1836 = vld [vmem:[%s1827 + $0x20] sm:$0xf]
      %v1837 = vld [vmem:[%s1827 + $0x24] sm:$0xf]
      %v1838 = vld [vmem:[%s1827 + $0x28] sm:$0xf]
      %v1839 = vld [vmem:[%s1827 + $0x2c] sm:$0xf]
      %v1840 = vld [vmem:[%s1827 + $0x30] sm:$0xf]
      %v1841 = vld [vmem:[%s1827 + $0x34] sm:$0xf]
      %v1842 = vld [vmem:[%s1827 + $0x38] sm:$0xf]
      %v1843 = vld [vmem:[%s1827 + $0x3c] sm:$0xf]
      %s1844 = scalar_lea.vmem %s3, 3
      %v1845 = vld [vmem:[%s1844] sm:$0x1]
      %v1847 = vlaneseq
      %v1848 = vshrl.u32 %v1847, 7
      %v1849 = vsub.s32 0, %v1848
      %v1850 = vrot.slane %v1845, %v1849
      %v1868 = vunpack.c.l.b16 %v1828
      %v1869 = vunpack.c.l.b16 %v1829
      %v1870 = vunpack.c.l.b16 %v1830
      %v1871 = vunpack.c.l.b16 %v1831
      %v1872 = vunpack.c.l.b16 %v1832
      %v1873 = vunpack.c.l.b16 %v1833
      %v1874 = vunpack.c.l.b16 %v1834
      %v1875 = vunpack.c.l.b16 %v1835
      %v1876 = vunpack.c.l.b16 %v1836
      %v1877 = vunpack.c.l.b16 %v1837
      %v1878 = vunpack.c.l.b16 %v1838
      %v1879 = vunpack.c.l.b16 %v1839
      %v1880 = vunpack.c.l.b16 %v1840
      %v1881 = vunpack.c.l.b16 %v1841
      %v1882 = vunpack.c.l.b16 %v1842
      %v1883 = vunpack.c.l.b16 %v1843
      %v1884 = vpack.c.b16 %v1869, %v1868
      %v1885 = vpack.c.b16 %v1871, %v1870
      %v1886 = vpack.c.b16 %v1873, %v1872
      %v1887 = vpack.c.b16 %v1875, %v1874
      %v1888 = vpack.c.b16 %v1877, %v1876
      %v1889 = vpack.c.b16 %v1879, %v1878
      %v1890 = vpack.c.b16 %v1881, %v1880
      %v1891 = vpack.c.b16 %v1883, %v1882
      %1900 = vmatprep.subr.bf16.mxu0 0
      %1901 = vmatpush1.bf16.msra.mxu0 %v1891
      %1902 = vmatprep.subr.bf16.mxu0 0
      %1903 = vmatpush1.bf16.msra.mxu0 %v1890
      %1904 = vmatprep.subr.bf16.mxu0 0
      %1905 = vmatpush1.bf16.msra.mxu0 %v1889
      %1906 = vmatprep.subr.bf16.mxu0 0
      %1907 = vmatpush1.bf16.msra.mxu0 %v1888
      %1908 = vmatprep.subr.bf16.mxu0 0
      %1909 = vmatpush1.bf16.msra.mxu0 %v1887
      %1910 = vmatprep.subr.bf16.mxu0 0
      %1911 = vmatpush1.bf16.msra.mxu0 %v1886
      %1912 = vmatprep.subr.bf16.mxu0 0
      %1913 = vmatpush1.bf16.msra.mxu0 %v1885
      %1914 = vmatprep.subr.bf16.mxu0 0
      %1915 = vmatpush1.bf16.msra.mxu0 %v1884
      %1916 = vmatprep.subr.bf16.mxu0 0
      %1917 = vmatpush2.bf16.msra.mxu0 0
      %1918 = vmatprep.subr.bf16.mxu0 0
      %1919 = vmatpush2.bf16.msra.mxu0 0
      %1920 = vmatprep.subr.bf16.mxu0 0
      %1921 = vmatpush2.bf16.msra.mxu0 0
      %1922 = vmatprep.subr.bf16.mxu0 0
      %1923 = vmatpush2.bf16.msra.mxu0 0
      %1924 = vmatprep.subr.bf16.mxu0 0
      %1925 = vmatpush2.bf16.msra.mxu0 0
      %1926 = vmatprep.subr.bf16.mxu0 0
      %1927 = vmatpush2.bf16.msra.mxu0 0
      %1928 = vmatprep.subr.bf16.mxu0 0
      %1929 = vmatpush2.bf16.msra.mxu0 0
      %1930 = vmatprep.subr.bf16.mxu0 0
      %1931 = vmatpush2.bf16.msra.mxu0 0
      %1932 = vmatprep.mubr.bf16.mxu0 0
      %1933 = vmatmul.mubr.bf16.gmra.mxu0 %v1826
      %v1934 = vpop.f32.mrf.mxu0
      %v1935 = vadd.f32 %v1850, %v1934
      %v1936 = vpop.f32.mrf.mxu0
      %v1937 = vpop.f32.mrf.mxu0
      %v1938 = vpop.f32.mrf.mxu0
      %1939 = vdwg.mxu0
      %v1940 = vmax.f32 %v1935, 0.0
      %v1941 = vpack.c.bf16 %v1940, %v1940
      %s1942 = scalar_lea.vmem %s4, 384
      %v1943 = vld [vmem:[%s1942] sm:$0xf]
      %v1944 = vld [vmem:[%s1942 + $0x4] sm:$0xf]
      %v1945 = vld [vmem:[%s1942 + $0x8] sm:$0xf]
      %v1946 = vld [vmem:[%s1942 + $0xc] sm:$0xf]
      %v1947 = vld [vmem:[%s1942 + $0x10] sm:$0xf]
      %v1948 = vld [vmem:[%s1942 + $0x14] sm:$0xf]
      %v1949 = vld [vmem:[%s1942 + $0x18] sm:$0xf]
      %v1950 = vld [vmem:[%s1942 + $0x1c] sm:$0xf]
      %v1951 = vld [vmem:[%s1942 + $0x20] sm:$0xf]
      %v1952 = vld [vmem:[%s1942 + $0x24] sm:$0xf]
      %v1953 = vld [vmem:[%s1942 + $0x28] sm:$0xf]
      %v1954 = vld [vmem:[%s1942 + $0x2c] sm:$0xf]
      %v1955 = vld [vmem:[%s1942 + $0x30] sm:$0xf]
      %v1956 = vld [vmem:[%s1942 + $0x34] sm:$0xf]
      %v1957 = vld [vmem:[%s1942 + $0x38] sm:$0xf]
      %v1958 = vld [vmem:[%s1942 + $0x3c] sm:$0xf]
      %s1959 = scalar_lea.vmem %s5, 6
      %v1960 = vld [vmem:[%s1959] sm:$0x1]
      %v1962 = vlaneseq
      %v1963 = vshrl.u32 %v1962, 7
      %v1964 = vsub.s32 0, %v1963
      %v1965 = vrot.slane %v1960, %v1964
      %v1983 = vunpack.c.l.b16 %v1943
      %v1984 = vunpack.c.l.b16 %v1944
      %v1985 = vunpack.c.l.b16 %v1945
      %v1986 = vunpack.c.l.b16 %v1946
      %v1987 = vunpack.c.l.b16 %v1947
      %v1988 = vunpack.c.l.b16 %v1948
      %v1989 = vunpack.c.l.b16 %v1949
      %v1990 = vunpack.c.l.b16 %v1950
      %v1991 = vunpack.c.l.b16 %v1951
      %v1992 = vunpack.c.l.b16 %v1952
      %v1993 = vunpack.c.l.b16 %v1953
      %v1994 = vunpack.c.l.b16 %v1954
      %v1995 = vunpack.c.l.b16 %v1955
      %v1996 = vunpack.c.l.b16 %v1956
      %v1997 = vunpack.c.l.b16 %v1957
      %v1998 = vunpack.c.l.b16 %v1958
      %v1999 = vpack.c.b16 %v1984, %v1983
      %v2000 = vpack.c.b16 %v1986, %v1985
      %v2001 = vpack.c.b16 %v1988, %v1987
      %v2002 = vpack.c.b16 %v1990, %v1989
      %v2003 = vpack.c.b16 %v1992, %v1991
      %v2004 = vpack.c.b16 %v1994, %v1993
      %v2005 = vpack.c.b16 %v1996, %v1995
      %v2006 = vpack.c.b16 %v1998, %v1997
      %2015 = vmatprep.subr.bf16.mxu0 0
      %2016 = vmatpush1.bf16.msra.mxu0 %v2006
      %2017 = vmatprep.subr.bf16.mxu0 0
      %2018 = vmatpush1.bf16.msra.mxu0 %v2005
      %2019 = vmatprep.subr.bf16.mxu0 0
      %2020 = vmatpush1.bf16.msra.mxu0 %v2004
      %2021 = vmatprep.subr.bf16.mxu0 0
      %2022 = vmatpush1.bf16.msra.mxu0 %v2003
      %2023 = vmatprep.subr.bf16.mxu0 0
      %2024 = vmatpush1.bf16.msra.mxu0 %v2002
      %2025 = vmatprep.subr.bf16.mxu0 0
      %2026 = vmatpush1.bf16.msra.mxu0 %v2001
      %2027 = vmatprep.subr.bf16.mxu0 0
      %2028 = vmatpush1.bf16.msra.mxu0 %v2000
      %2029 = vmatprep.subr.bf16.mxu0 0
      %2030 = vmatpush1.bf16.msra.mxu0 %v1999
      %2031 = vmatprep.subr.bf16.mxu0 0
      %2032 = vmatpush2.bf16.msra.mxu0 0
      %2033 = vmatprep.subr.bf16.mxu0 0
      %2034 = vmatpush2.bf16.msra.mxu0 0
      %2035 = vmatprep.subr.bf16.mxu0 0
      %2036 = vmatpush2.bf16.msra.mxu0 0
      %2037 = vmatprep.subr.bf16.mxu0 0
      %2038 = vmatpush2.bf16.msra.mxu0 0
      %2039 = vmatprep.subr.bf16.mxu0 0
      %2040 = vmatpush2.bf16.msra.mxu0 0
      %2041 = vmatprep.subr.bf16.mxu0 0
      %2042 = vmatpush2.bf16.msra.mxu0 0
      %2043 = vmatprep.subr.bf16.mxu0 0
      %2044 = vmatpush2.bf16.msra.mxu0 0
      %2045 = vmatprep.subr.bf16.mxu0 0
      %2046 = vmatpush2.bf16.msra.mxu0 0
      %2047 = vmatprep.mubr.bf16.mxu0 0
      %2048 = vmatmul.mubr.bf16.gmra.mxu0 %v1941
      %v2049 = vpop.f32.mrf.mxu0
      %v2050 = vadd.f32 %v1965, %v2049
      %v2051 = vpop.f32.mrf.mxu0
      %v2052 = vpop.f32.mrf.mxu0
      %v2053 = vpop.f32.mrf.mxu0
      %2054 = vdwg.mxu0
      %v2055 = vmax.f32 %v2050, 0.0
      %v2056 = vpack.c.bf16 %v2055, %v2055
      %s2057 = scalar_lea.vmem %s4, 448
      %v2058 = vld [vmem:[%s2057] sm:$0xf]
      %v2059 = vld [vmem:[%s2057 + $0x4] sm:$0xf]
      %v2060 = vld [vmem:[%s2057 + $0x8] sm:$0xf]
      %v2061 = vld [vmem:[%s2057 + $0xc] sm:$0xf]
      %v2062 = vld [vmem:[%s2057 + $0x10] sm:$0xf]
      %v2063 = vld [vmem:[%s2057 + $0x14] sm:$0xf]
      %v2064 = vld [vmem:[%s2057 + $0x18] sm:$0xf]
      %v2065 = vld [vmem:[%s2057 + $0x1c] sm:$0xf]
      %v2066 = vld [vmem:[%s2057 + $0x20] sm:$0xf]
      %v2067 = vld [vmem:[%s2057 + $0x24] sm:$0xf]
      %v2068 = vld [vmem:[%s2057 + $0x28] sm:$0xf]
      %v2069 = vld [vmem:[%s2057 + $0x2c] sm:$0xf]
      %v2070 = vld [vmem:[%s2057 + $0x30] sm:$0xf]
      %v2071 = vld [vmem:[%s2057 + $0x34] sm:$0xf]
      %v2072 = vld [vmem:[%s2057 + $0x38] sm:$0xf]
      %v2073 = vld [vmem:[%s2057 + $0x3c] sm:$0xf]
      %s2074 = scalar_lea.vmem %s5, 7
      %v2075 = vld [vmem:[%s2074] sm:$0x1]
      %v2077 = vlaneseq
      %v2078 = vshrl.u32 %v2077, 7
      %v2079 = vsub.s32 0, %v2078
      %v2080 = vrot.slane %v2075, %v2079
      %v2098 = vunpack.c.l.b16 %v2058
      %v2099 = vunpack.c.l.b16 %v2059
      %v2100 = vunpack.c.l.b16 %v2060
      %v2101 = vunpack.c.l.b16 %v2061
      %v2102 = vunpack.c.l.b16 %v2062
      %v2103 = vunpack.c.l.b16 %v2063
      %v2104 = vunpack.c.l.b16 %v2064
      %v2105 = vunpack.c.l.b16 %v2065
      %v2106 = vunpack.c.l.b16 %v2066
      %v2107 = vunpack.c.l.b16 %v2067
      %v2108 = vunpack.c.l.b16 %v2068
      %v2109 = vunpack.c.l.b16 %v2069
      %v2110 = vunpack.c.l.b16 %v2070
      %v2111 = vunpack.c.l.b16 %v2071
      %v2112 = vunpack.c.l.b16 %v2072
      %v2113 = vunpack.c.l.b16 %v2073
      %v2114 = vpack.c.b16 %v2099, %v2098
      %v2115 = vpack.c.b16 %v2101, %v2100
      %v2116 = vpack.c.b16 %v2103, %v2102
      %v2117 = vpack.c.b16 %v2105, %v2104
      %v2118 = vpack.c.b16 %v2107, %v2106
      %v2119 = vpack.c.b16 %v2109, %v2108
      %v2120 = vpack.c.b16 %v2111, %v2110
      %v2121 = vpack.c.b16 %v2113, %v2112
      %2130 = vmatprep.subr.bf16.mxu0 0
      %2131 = vmatpush1.bf16.msra.mxu0 %v2121
      %2132 = vmatprep.subr.bf16.mxu0 0
      %2133 = vmatpush1.bf16.msra.mxu0 %v2120
      %2134 = vmatprep.subr.bf16.mxu0 0
      %2135 = vmatpush1.bf16.msra.mxu0 %v2119
      %2136 = vmatprep.subr.bf16.mxu0 0
      %2137 = vmatpush1.bf16.msra.mxu0 %v2118
      %2138 = vmatprep.subr.bf16.mxu0 0
      %2139 = vmatpush1.bf16.msra.mxu0 %v2117
      %2140 = vmatprep.subr.bf16.mxu0 0
      %2141 = vmatpush1.bf16.msra.mxu0 %v2116
      %2142 = vmatprep.subr.bf16.mxu0 0
      %2143 = vmatpush1.bf16.msra.mxu0 %v2115
      %2144 = vmatprep.subr.bf16.mxu0 0
      %2145 = vmatpush1.bf16.msra.mxu0 %v2114
      %2146 = vmatprep.subr.bf16.mxu0 0
      %2147 = vmatpush2.bf16.msra.mxu0 0
      %2148 = vmatprep.subr.bf16.mxu0 0
      %2149 = vmatpush2.bf16.msra.mxu0 0
      %2150 = vmatprep.subr.bf16.mxu0 0
      %2151 = vmatpush2.bf16.msra.mxu0 0
      %2152 = vmatprep.subr.bf16.mxu0 0
      %2153 = vmatpush2.bf16.msra.mxu0 0
      %2154 = vmatprep.subr.bf16.mxu0 0
      %2155 = vmatpush2.bf16.msra.mxu0 0
      %2156 = vmatprep.subr.bf16.mxu0 0
      %2157 = vmatpush2.bf16.msra.mxu0 0
      %2158 = vmatprep.subr.bf16.mxu0 0
      %2159 = vmatpush2.bf16.msra.mxu0 0
      %2160 = vmatprep.subr.bf16.mxu0 0
      %2161 = vmatpush2.bf16.msra.mxu0 0
      %2162 = vmatprep.mubr.bf16.mxu0 0
      %2163 = vmatmul.mubr.bf16.gmra.mxu0 %v2056
      %v2164 = vpop.f32.mrf.mxu0
      %v2165 = vadd.f32 %v2080, %v2164
      %v2166 = vpop.f32.mrf.mxu0
      %v2167 = vpop.f32.mrf.mxu0
      %v2168 = vpop.f32.mrf.mxu0
      %2169 = vdwg.mxu0
      %v2170 = vmax.f32 %v2165, 0.0
      %v2171 = vpack.c.bf16 %v2170, %v2170
      %s2172 = scalar_lea.vmem %s6, 192
      %v2173 = vld [vmem:[%s2172] sm:$0xf]
      %v2174 = vld [vmem:[%s2172 + $0x4] sm:$0xf]
      %v2175 = vld [vmem:[%s2172 + $0x8] sm:$0xf]
      %v2176 = vld [vmem:[%s2172 + $0xc] sm:$0xf]
      %v2177 = vld [vmem:[%s2172 + $0x10] sm:$0xf]
      %v2178 = vld [vmem:[%s2172 + $0x14] sm:$0xf]
      %v2179 = vld [vmem:[%s2172 + $0x18] sm:$0xf]
      %v2180 = vld [vmem:[%s2172 + $0x1c] sm:$0xf]
      %v2181 = vld [vmem:[%s2172 + $0x20] sm:$0xf]
      %v2182 = vld [vmem:[%s2172 + $0x24] sm:$0xf]
      %v2183 = vld [vmem:[%s2172 + $0x28] sm:$0xf]
      %v2184 = vld [vmem:[%s2172 + $0x2c] sm:$0xf]
      %v2185 = vld [vmem:[%s2172 + $0x30] sm:$0xf]
      %v2186 = vld [vmem:[%s2172 + $0x34] sm:$0xf]
      %v2187 = vld [vmem:[%s2172 + $0x38] sm:$0xf]
      %v2188 = vld [vmem:[%s2172 + $0x3c] sm:$0xf]
      %s2189 = scalar_lea.vmem %s7, 3
      %v2190 = vld [vmem:[%s2189] sm:$0x1]
      %v2192 = vlaneseq
      %v2193 = vshrl.u32 %v2192, 7
      %v2194 = vsub.s32 0, %v2193
      %v2195 = vrot.slane %v2190, %v2194
      %v2213 = vunpack.c.l.b16 %v2173
      %v2214 = vunpack.c.l.b16 %v2174
      %v2215 = vunpack.c.l.b16 %v2175
      %v2216 = vunpack.c.l.b16 %v2176
      %v2217 = vunpack.c.l.b16 %v2177
      %v2218 = vunpack.c.l.b16 %v2178
      %v2219 = vunpack.c.l.b16 %v2179
      %v2220 = vunpack.c.l.b16 %v2180
      %v2221 = vunpack.c.l.b16 %v2181
      %v2222 = vunpack.c.l.b16 %v2182
      %v2223 = vunpack.c.l.b16 %v2183
      %v2224 = vunpack.c.l.b16 %v2184
      %v2225 = vunpack.c.l.b16 %v2185
      %v2226 = vunpack.c.l.b16 %v2186
      %v2227 = vunpack.c.l.b16 %v2187
      %v2228 = vunpack.c.l.b16 %v2188
      %v2229 = vpack.c.b16 %v2214, %v2213
      %v2230 = vpack.c.b16 %v2216, %v2215
      %v2231 = vpack.c.b16 %v2218, %v2217
      %v2232 = vpack.c.b16 %v2220, %v2219
      %v2233 = vpack.c.b16 %v2222, %v2221
      %v2234 = vpack.c.b16 %v2224, %v2223
      %v2235 = vpack.c.b16 %v2226, %v2225
      %v2236 = vpack.c.b16 %v2228, %v2227
      %2245 = vmatprep.subr.bf16.mxu0 0
      %2246 = vmatpush1.bf16.msra.mxu0 %v2236
      %2247 = vmatprep.subr.bf16.mxu0 0
      %2248 = vmatpush1.bf16.msra.mxu0 %v2235
      %2249 = vmatprep.subr.bf16.mxu0 0
      %2250 = vmatpush1.bf16.msra.mxu0 %v2234
      %2251 = vmatprep.subr.bf16.mxu0 0
      %2252 = vmatpush1.bf16.msra.mxu0 %v2233
      %2253 = vmatprep.subr.bf16.mxu0 0
      %2254 = vmatpush1.bf16.msra.mxu0 %v2232
      %2255 = vmatprep.subr.bf16.mxu0 0
      %2256 = vmatpush1.bf16.msra.mxu0 %v2231
      %2257 = vmatprep.subr.bf16.mxu0 0
      %2258 = vmatpush1.bf16.msra.mxu0 %v2230
      %2259 = vmatprep.subr.bf16.mxu0 0
      %2260 = vmatpush1.bf16.msra.mxu0 %v2229
      %2261 = vmatprep.subr.bf16.mxu0 0
      %2262 = vmatpush2.bf16.msra.mxu0 0
      %2263 = vmatprep.subr.bf16.mxu0 0
      %2264 = vmatpush2.bf16.msra.mxu0 0
      %2265 = vmatprep.subr.bf16.mxu0 0
      %2266 = vmatpush2.bf16.msra.mxu0 0
      %2267 = vmatprep.subr.bf16.mxu0 0
      %2268 = vmatpush2.bf16.msra.mxu0 0
      %2269 = vmatprep.subr.bf16.mxu0 0
      %2270 = vmatpush2.bf16.msra.mxu0 0
      %2271 = vmatprep.subr.bf16.mxu0 0
      %2272 = vmatpush2.bf16.msra.mxu0 0
      %2273 = vmatprep.subr.bf16.mxu0 0
      %2274 = vmatpush2.bf16.msra.mxu0 0
      %2275 = vmatprep.subr.bf16.mxu0 0
      %2276 = vmatpush2.bf16.msra.mxu0 0
      %2277 = vmatprep.mubr.bf16.mxu0 0
      %2278 = vmatmul.mubr.bf16.gmra.mxu0 %v2171
      %v2279 = vpop.f32.mrf.mxu0
      %v2280 = vadd.f32 %v2195, %v2279
      %v2281 = vpop.f32.mrf.mxu0
      %v2282 = vpop.f32.mrf.mxu0
      %v2283 = vpop.f32.mrf.mxu0
      %2284 = vdwg.mxu0
      %v2285 = vadd.f32 %v1365, %v2280
      %v2287 = vlaneseq
      %v2288 = vshrl.u32 %v2287, 7
      %v2289 = vsub.s32 0, %v2288
      %v2290 = vrot.slane %v450, %v2289
      %v2292 = vmul.f32 %v1825, %v2290
      %v2294 = vlaneseq
      %v2295 = vshrl.u32 %v2294, 7
      %v2296 = vsub.s32 0, %v2295
      %v2297 = vrot.slane %v451, %v2296
      %v2299 = vmul.f32 %v2285, %v2297
      %2300 = vst [vmem:[%s438] sm:$0xff] %v2292
      %2301 = vst [vmem:[%s442] sm:$0xff] %v2299
      %v2302 = vmul.f32 %v2292, -0.5
      %v2303 = vmul.f32 %v2302, %v2292
      %2304 = vadd.xlane.f32.xlu0 %v2303
      %v2305 = vpop.xlane.xlu0 %2304
      %v2306 = vmul.f32 %v2299, -0.5
      %v2307 = vmul.f32 %v2306, %v2299
      %2308 = vadd.xlane.f32.xlu0 %v2307
      %v2309 = vpop.xlane.xlu0 %2308
      %v2310 = vadd.f32 %v2305, %v2309
      %v2311 = vsub.f32 %v2310, 14.703016
      %2312 = vst [vmem:[%s446] sm:$0xff] %v2311
      %p2313 = scmp.lt.s32.totalorder %s24, 1
      %s2314 = scalar_select %p2313, %s24, 1
      %s2315 = smul.addr %s2314, 8
      %s2316 = scalar_lea.vmem %s10, %s2315
      %p2317 = scmp.lt.s32.totalorder %s24, 1
      %s2318 = scalar_select %p2317, %s24, 1
      %s2319 = smul.addr %s2318, 8
      %s2320 = scalar_lea.vmem %s11, %s2319
      %p2321 = scmp.lt.s32.totalorder %s24, 1
      %s2322 = scalar_select %p2321, %s24, 1
      %s2323 = smul.addr %s2322, 8
      %s2324 = scalar_lea.vmem %s12, %s2323
      // Predicated region
      $region61: #{nice_apply.1} parent=59 // pred_check
        %p2325 = pneg %p262
      $region62: #{nice_apply.1} parent=59 // pred_check_branch
        %2327 = sbr.rel (%p2325) target = $region64
      $region63: #{nice_apply.1} parent=59 // pred_region
        _
      $region64: #{nice_apply.1} parent=59 // pred_fallthru
        _
      // Predicated region
      $region65: #{nice_apply.1} parent=59 // pred_check
        %p2328 = pneg %p288
      $region66: #{nice_apply.1} parent=59 // pred_check_branch
        %2330 = sbr.rel (%p2328) target = $region68
      $region67: #{nice_apply.1} parent=59 // pred_region
        _
      $region68: #{nice_apply.1} parent=59 // pred_fallthru
        _
      // Predicated region
      $region69: #{nice_apply.1} parent=59 // pred_check
        %p2331 = pneg %p314
      $region70: #{nice_apply.1} parent=59 // pred_check_branch
        %2333 = sbr.rel (%p2331) target = $region72
      $region71: #{nice_apply.1} parent=59 // pred_region
        _
      $region72: #{nice_apply.1} parent=59 // pred_fallthru
        _
    $region60: #{nice_apply.1} parent=5 // pred_fallthru
      _
    %p2334 = scmp.le.s32.totalorder 2, %s19
    // Predicated region
    $region73: #{nice_apply.1} parent=5 // pred_check
      %p2335 = pneg %p2334
    $region74: #{nice_apply.1} parent=5 // pred_check_branch
      %2337 = sbr.rel (%p2335) target = $region76
    $region75: #{nice_apply.1} parent=5 // pred_region
      %s2338 = ssub.s32 %s19, 2
      // Predicated region
      $region77: #{nice_apply.1} parent=75 // pred_check
        %p2339 = pneg %p268
      $region78: #{nice_apply.1} parent=75 // pred_check_branch
        %2341 = sbr.rel (%p2339) target = $region80
      $region79: #{nice_apply.1} parent=75 // pred_region
        %p2342 = scmp.lt.s32.totalorder %s25, 1
        %s2343 = scalar_select %p2342, %s25, 1
        %s2344 = smul.addr %s2343, 8
        %s2345 = scalar_lea.vmem %s10, %s2344
      $region80: #{nice_apply.1} parent=75 // pred_fallthru
        _
      // Predicated region
      $region81: #{nice_apply.1} parent=75 // pred_check
        %p2346 = pneg %p294
      $region82: #{nice_apply.1} parent=75 // pred_check_branch
        %2348 = sbr.rel (%p2346) target = $region84
      $region83: #{nice_apply.1} parent=75 // pred_region
        %p2349 = scmp.lt.s32.totalorder %s25, 1
        %s2350 = scalar_select %p2349, %s25, 1
        %s2351 = smul.addr %s2350, 8
        %s2352 = scalar_lea.vmem %s11, %s2351
      $region84: #{nice_apply.1} parent=75 // pred_fallthru
        _
      // Predicated region
      $region85: #{nice_apply.1} parent=75 // pred_check
        %p2353 = pneg %p320
      $region86: #{nice_apply.1} parent=75 // pred_check_branch
        %2355 = sbr.rel (%p2353) target = $region88
      $region87: #{nice_apply.1} parent=75 // pred_region
        %p2356 = scmp.lt.s32.totalorder %s25, 1
        %s2357 = scalar_select %p2356, %s25, 1
        %s2358 = smul.addr %s2357, 8
        %s2359 = scalar_lea.vmem %s12, %s2358
      $region88: #{nice_apply.1} parent=75 // pred_fallthru
        _
    $region76: #{nice_apply.1} parent=5 // pred_fallthru
      _
  $region6: #{nice_apply.1} parent=0 // loop_footer
    %s23 = sadd.s32 1, %s19
  $region7: #{nice_apply.1} parent=0 // loop_footer_branch
    %18 = sbr.rel target = $region3
  $region8: #{nice_apply.1} parent=0 // loop_exit
    _

</llo_original>
